<compile_context>
chip_gen: v6e
topology: v6e:2x2x1
jax: 0.10.0
libtpu: 0.0.40
codegen_flags: <defaults>
</compile_context>

<pallas_src>
import functools

import jax
import jax.numpy as jnp
from jax.experimental import pallas as pl
from jax.experimental.pallas import tpu as pltpu

LN_EPS = 1e-5          # nn.LayerNorm default
LRELU_SLOPE = 0.01     # F.leaky_relu default negative_slope
_VMEM_LIMIT = 48 * 1024 * 1024   # explicit scoped-VMEM budget (< physical on v5e/v6e/v7x)


# ----------------------------------------------------------------------------
# In-kernel helpers
# ----------------------------------------------------------------------------
def _layer_norm(x, gamma, beta):
    mean = jnp.mean(x, axis=-1, keepdims=True)
    var = jnp.mean(jnp.square(x - mean), axis=-1, keepdims=True)
    return (x - mean) * jax.lax.rsqrt(var + LN_EPS) * gamma + beta


def _attention_core(x, kv, mask, num_heads,
                    wq_t, wk_t, wv_t, bq, bk, bv, wo_t, bo):
    """Multi-head attention for one (Lq-tile, full-Lk) block.

    x: (Lq, E) queries (native dtype); kv: (Lk, E).
    Weights are pre-transposed (E, E); the 1/sqrt(dh) scale is folded into wq_t / bq.
    Returns (Lq, E) float32.
    """
    Lq, E = x.shape
    Lk = kv.shape[0]
    dh = E // num_heads

    # Projections (MXU, f32 accumulation).
    q = jnp.dot(x, wq_t, preferred_element_type=jnp.float32) + bq     # (Lq, E), pre-scaled
    k = jnp.dot(kv, wk_t, preferred_element_type=jnp.float32) + bk    # (Lk, E)
    v = jnp.dot(kv, wv_t, preferred_element_type=jnp.float32) + bv    # (Lk, E)

    # Head-leading batched layout: (H, L, dh).
    q = jnp.transpose(q.reshape(Lq, num_heads, dh), (1, 0, 2))
    k = jnp.transpose(k.reshape(Lk, num_heads, dh), (1, 0, 2))
    v = jnp.transpose(v.reshape(Lk, num_heads, dh), (1, 0, 2))

    # Batched score contraction over all heads at once.
    s = jnp.einsum("hqd,hkd->hqk", q, k, preferred_element_type=jnp.float32)
    if mask is not None:
        s = s + mask[None, :, :]

    # Numerically stable softmax; exact normalization (reciprocal on the EUP,
    # broadcast multiply on the VPU).
    m = jnp.max(s, axis=-1, keepdims=True)
    p = jnp.exp(s - m)
    denom = jnp.sum(p, axis=-1, keepdims=True)
    p = p * (1.0 / denom)

    ctx = jnp.einsum("hqk,hkd->hqd", p, v, preferred_element_type=jnp.float32)
    ctx = jnp.transpose(ctx, (1, 0, 2)).reshape(Lq, E)                 # concat heads
    return jnp.dot(ctx.astype(wo_t.dtype), wo_t,
                   preferred_element_type=jnp.float32) + bo


# ----------------------------------------------------------------------------
# Kernel 1: self-attention + LayerNorm1 + residual (mask optional)
# ----------------------------------------------------------------------------
def _self_attn_ln_kernel(*refs, num_heads, has_mask):
    if has_mask:
        (q_ref, kv_ref, mask_ref,
         wq_ref, wk_ref, wv_ref, bq_ref, bk_ref, bv_ref, wo_ref, bo_ref,
         g_ref, b_ref, out_ref) = refs
        mask = mask_ref[...].astype(jnp.float32)
    else:
        (q_ref, kv_ref,
         wq_ref, wk_ref, wv_ref, bq_ref, bk_ref, bv_ref, wo_ref, bo_ref,
         g_ref, b_ref, out_ref) = refs
        mask = None

    x = q_ref[0]                                  # (tq, E) -- also the residual
    attn = _attention_core(x, kv_ref[0], mask, num_heads,
                           wq_ref[...], wk_ref[...], wv_ref[...],
                           bq_ref[...], bk_ref[...], bv_ref[...],
                           wo_ref[...], bo_ref[...])
    y = _layer_norm(attn, g_ref[...], b_ref[...]) + x.astype(jnp.float32)
    out_ref[0] = y.astype(out_ref.dtype)


# ----------------------------------------------------------------------------
# Kernel 2: cross-attention + LN2 + residual + fc + leaky_relu + LN3 + residual
# ----------------------------------------------------------------------------
def _cross_attn_mlp_kernel(q_ref, kv_ref,
                           wq_ref, wk_ref, wv_ref, bq_ref, bk_ref, bv_ref,
                           wo_ref, bo_ref, g2_ref, b2_ref,
                           wfc_ref, bfc_ref, g3_ref, b3_ref, out_ref,
                           *, num_heads):
    x = q_ref[0]                                  # (tq, E) -- also the residual
    attn = _attention_core(x, kv_ref[0], None, num_heads,
                           wq_ref[...], wk_ref[...], wv_ref[...],
                           bq_ref[...], bk_ref[...], bv_ref[...],
                           wo_ref[...], bo_ref[...])
    t = _layer_norm(attn, g2_ref[...], b2_ref[...]) + x.astype(jnp.float32)
    y = jnp.dot(t.astype(wfc_ref.dtype), wfc_ref[...],
                preferred_element_type=jnp.float32) + bfc_ref[...]
    y = jnp.where(y >= 0, y, LRELU_SLOPE * y)
    out = _layer_norm(y, g3_ref[...], b3_ref[...]) + t
    out_ref[0] = out.astype(out_ref.dtype)


# ----------------------------------------------------------------------------
# Wrappers
# ----------------------------------------------------------------------------
def _pick_q_tile(Lq):
    for t in (512, 256, 128):
        if Lq % t == 0:
            return t
    return Lq


def _const_spec(shape):
    return pl.BlockSpec(shape, lambda b, i: (0,) * len(shape))


def self_attention_ln_block(tgt, attn_mask, attn_params, ln_params, num_heads):
    wq_t, wk_t, wv_t, bq, bk, bv, wo_t, bo = attn_params
    gamma, beta = ln_params
    B, Lt, E = tgt.shape
    tq = _pick_q_tile(Lt)
    has_mask = attn_mask is not None

    q_spec = pl.BlockSpec((1, tq, E), lambda b, i: (b, i, 0))
    kv_spec = pl.BlockSpec((1, Lt, E), lambda b, i: (b, 0, 0))
    w_spec = _const_spec((E, E))
    v_spec = _const_spec((1, E))

    in_specs = [q_spec, kv_spec]
    args = [tgt, tgt]
    if has_mask:
        in_specs.append(pl.BlockSpec((tq, Lt), lambda b, i: (i, 0)))
        args.append(attn_mask.astype(jnp.float32))
    in_specs += [w_spec, w_spec, w_spec, v_spec, v_spec, v_spec, w_spec, v_spec,
                 v_spec, v_spec]
    args += [wq_t, wk_t, wv_t, bq, bk, bv, wo_t, bo, gamma, beta]

    kernel = functools.partial(_self_attn_ln_kernel,
                               num_heads=num_heads, has_mask=has_mask)
    return pl.pallas_call(
        kernel,
        out_shape=jax.ShapeDtypeStruct((B, Lt, E), tgt.dtype),
        grid=(B, Lt // tq),
        in_specs=in_specs,
        out_specs=q_spec,
        compiler_params=pltpu.CompilerParams(
            dimension_semantics=("parallel", "parallel"),
            vmem_limit_bytes=_VMEM_LIMIT),
    )(*args)


def cross_attention_mlp_block(tgt, src, attn_params, ln2_params, fc_params,
                              ln3_params, num_heads):
    wq_t, wk_t, wv_t, bq, bk, bv, wo_t, bo = attn_params
    g2, b2 = ln2_params
    wfc_t, bfc = fc_params
    g3, b3 = ln3_params
    B, Lt, E = tgt.shape
    Ls = src.shape[1]
    tq = _pick_q_tile(Lt)

    q_spec = pl.BlockSpec((1, tq, E), lambda b, i: (b, i, 0))
    kv_spec = pl.BlockSpec((1, Ls, E), lambda b, i: (b, 0, 0))
    w_spec = _const_spec((E, E))
    v_spec = _const_spec((1, E))

    in_specs = [q_spec, kv_spec,
                w_spec, w_spec, w_spec, v_spec, v_spec, v_spec, w_spec, v_spec,
                v_spec, v_spec, w_spec, v_spec, v_spec, v_spec]
    args = [tgt, src, wq_t, wk_t, wv_t, bq, bk, bv, wo_t, bo,
            g2, b2, wfc_t, bfc, g3, b3]

    kernel = functools.partial(_cross_attn_mlp_kernel, num_heads=num_heads)
    return pl.pallas_call(
        kernel,
        out_shape=jax.ShapeDtypeStruct((B, Lt, E), tgt.dtype),
        grid=(B, Lt // tq),
        in_specs=in_specs,
        out_specs=q_spec,
        compiler_params=pltpu.CompilerParams(
            dimension_semantics=("parallel", "parallel"),
            vmem_limit_bytes=_VMEM_LIMIT),
    )(*args)


def prepare_params(raw, num_heads):
    """One-time host-side prep: transpose weights, fold 1/sqrt(dh) into Wq/bq,
    reshape 1-D vectors to (1, E)."""
    def prep_attn(p):
        wq, wk, wv, bq, bk, bv, wo, bo = p
        E = wq.shape[0]
        scale = 1.0 / ((E // num_heads) ** 0.5)
        return (wq.T * scale, wk.T, wv.T,
                (bq * scale).reshape(1, E), bk.reshape(1, E), bv.reshape(1, E),
                wo.T, bo.reshape(1, E))

    def prep_vec(v):
        return v.reshape(1, -1)

    E = raw["fc"][0].shape[0]
    return {
        "self_attn": prep_attn(raw["self_attn"]),
        "cross_attn": prep_attn(raw["cross_attn"]),
        "ln1": tuple(prep_vec(v) for v in raw["ln1"]),
        "ln2": tuple(prep_vec(v) for v in raw["ln2"]),
        "ln3": tuple(prep_vec(v) for v in raw["ln3"]),
        "fc": (raw["fc"][0].T, raw["fc"][1].reshape(1, E)),
    }


def block_forward(src, tgt, raw_params, num_heads, attn_mask=None):
    # TODO(synk): only the 2-D additive float attn_mask variant of
    # nn.MultiheadAttention is supported; boolean masks, (B*H, Lq, Lk) masks and
    # key_padding_mask are not handled.
    p = prepare_params(raw_params, num_heads)
    tgt = self_attention_ln_block(tgt, attn_mask, p["self_attn"], p["ln1"],
                                  num_heads)
    return cross_attention_mlp_block(tgt, src, p["cross_attn"], p["ln2"],
                                     p["fc"], p["ln3"], num_heads)


# ----------------------------------------------------------------------------
# Pure-JAX reference (mirrors torch semantics) for correctness checking
# ----------------------------------------------------------------------------
_HI = jax.lax.Precision.HIGHEST


def _ref_mha(q_in, kv_in, params, num_heads, mask):
    wq, wk, wv, bq, bk, bv, wo, bo = params
    B, Lq, E = q_in.shape
    Lk = kv_in.shape[1]
    dh = E // num_heads
    q = (jnp.dot(q_in, wq.T, precision=_HI) + bq).reshape(B, Lq, num_heads, dh)
    k = (jnp.dot(kv_in, wk.T, precision=_HI) + bk).reshape(B, Lk, num_heads, dh)
    v = (jnp.dot(kv_in, wv.T, precision=_HI) + bv).reshape(B, Lk, num_heads, dh)
    q, k, v = (a.transpose(0, 2, 1, 3) for a in (q, k, v))
    s = jnp.einsum("bhqd,bhkd->bhqk", q, k, precision=_HI) / jnp.sqrt(dh) + mask
    p = jax.nn.softmax(s, axis=-1)
    ctx = jnp.einsum("bhqk,bhkd->bhqd", p, v, precision=_HI)
    ctx = ctx.transpose(0, 2, 1, 3).reshape(B, Lq, E)
    return jnp.dot(ctx, wo.T, precision=_HI) + bo


def _ref_ln(x, gamma, beta):
    mean = jnp.mean(x, axis=-1, keepdims=True)
    var = jnp.mean((x - mean) ** 2, axis=-1, keepdims=True)
    return (x - mean) * jax.lax.rsqrt(var + LN_EPS) * gamma + beta


def ref_forward(src, tgt, params, num_heads, attn_mask=None):
    Lt = tgt.shape[1]
    mask = jnp.zeros((Lt, Lt), jnp.float32) if attn_mask is None else attn_mask
    tgt_dash = _ref_mha(tgt, tgt, params["self_attn"], num_heads, mask)
    tgt = _ref_ln(tgt_dash, *params["ln1"]) + tgt
    src_dash = _ref_mha(tgt, src, params["cross_attn"], num_heads,
                        jnp.zeros((Lt, src.shape[1]), jnp.float32))
    tgt = _ref_ln(src_dash, *params["ln2"]) + tgt
    w, b = params["fc"]
    y = jnp.dot(tgt, w.T, precision=_HI) + b
    y = jnp.where(y >= 0, y, LRELU_SLOPE * y)
    return _ref_ln(y, *params["ln3"]) + tgt


# ----------------------------------------------------------------------------
# Deterministic parameter initialization (shapes per the PyTorch __init__)
# ----------------------------------------------------------------------------
def init_params(key, feature_dim):
    E = feature_dim
    ks = jax.random.split(key, 16)

    def mha_params(k0):
        kk = jax.random.split(k0, 8)
        return tuple(
            [0.05 * jax.random.normal(kk[i], (E, E), jnp.float32) for i in range(3)]
            + [0.05 * jax.random.normal(kk[3 + i], (E,), jnp.float32) for i in range(3)]
            + [0.05 * jax.random.normal(kk[6], (E, E), jnp.float32),
               0.05 * jax.random.normal(kk[7], (E,), jnp.float32)]
        )

    def ln_params(k0):
        k1, k2 = jax.random.split(k0)
        return (1.0 + 0.1 * jax.random.normal(k1, (E,), jnp.float32),
                0.05 * jax.random.normal(k2, (E,), jnp.float32))

    return {
        "self_attn": mha_params(ks[0]),
        "cross_attn": mha_params(ks[1]),
        "ln1": ln_params(ks[2]),
        "ln2": ln_params(ks[3]),
        "ln3": ln_params(ks[4]),
        "fc": (0.05 * jax.random.normal(ks[5], (E, E), jnp.float32),
               0.05 * jax.random.normal(ks[6], (E,), jnp.float32)),
    }


if __name__ == "__main__":
    B, Lt, Ls, E, H = 2, 8, 8, 32, 4
    key = jax.random.PRNGKey(0)
    k_src, k_tgt, k_par = jax.random.split(key, 3)
    src = jax.random.normal(k_src, (B, Ls, E), jnp.float32)
    tgt = jax.random.normal(k_tgt, (B, Lt, E), jnp.float32)
    params = init_params(k_par, E)

    # No-mask path (no mask operand in the kernel at all).
    out = jax.block_until_ready(block_forward(src, tgt, params, H))
    ref = ref_forward(src, tgt, params, H)
    assert out.shape == (B, Lt, E)
    assert jnp.allclose(out, ref, atol=2e-3, rtol=2e-3), "mismatch (no mask)"

    # Additive float mask path (causal).
    causal = jnp.where(jnp.arange(Lt)[:, None] >= jnp.arange(Lt)[None, :],
                       0.0, -1e9).astype(jnp.float32)
    out_m = jax.block_until_ready(block_forward(src, tgt, params, H, attn_mask=causal))
    ref_m = ref_forward(src, tgt, params, H, attn_mask=causal)
    assert jnp.allclose(out_m, ref_m, atol=2e-3, rtol=2e-3), "mismatch (masked)"

    print("KERNEL_OK")
</pallas_src>

<mosaic_0001>
module attributes {stable_mosaic.version = 11 : i64} {
  func.func @_self_attn_ln_kernel(%arg0: i32, %arg1: i32, %arg2: memref<1x8x32xf32, #tpu.memory_space<vmem>>, %arg3: memref<1x8x32xf32, #tpu.memory_space<vmem>>, %arg4: memref<32x32xf32, #tpu.memory_space<vmem>>, %arg5: memref<32x32xf32, #tpu.memory_space<vmem>>, %arg6: memref<32x32xf32, #tpu.memory_space<vmem>>, %arg7: memref<1x32xf32, #tpu.memory_space<vmem>>, %arg8: memref<1x32xf32, #tpu.memory_space<vmem>>, %arg9: memref<1x32xf32, #tpu.memory_space<vmem>>, %arg10: memref<32x32xf32, #tpu.memory_space<vmem>>, %arg11: memref<1x32xf32, #tpu.memory_space<vmem>>, %arg12: memref<1x32xf32, #tpu.memory_space<vmem>>, %arg13: memref<1x32xf32, #tpu.memory_space<vmem>>, %arg14: memref<1x8x32xf32, #tpu.memory_space<vmem>>) attributes {dimension_semantics = [#tpu.dimension_semantics<parallel>, #tpu.dimension_semantics<parallel>], iteration_bounds = array<i64: 2, 1>, scalar_prefetch = 0 : i64, scratch_operands = 0 : i64, tpu.core_type = #tpu.core_type<tc>, window_params = [{transform_indices = @transform_0, window_bounds = array<i64: 1, 8, 32>}, {transform_indices = @transform_1, window_bounds = array<i64: 1, 8, 32>}, {pipeline_mode = #tpu.pipeline_mode<synchronous>, transform_indices = @transform_2, window_bounds = array<i64: 32, 32>}, {pipeline_mode = #tpu.pipeline_mode<synchronous>, transform_indices = @transform_3, window_bounds = array<i64: 32, 32>}, {pipeline_mode = #tpu.pipeline_mode<synchronous>, transform_indices = @transform_4, window_bounds = array<i64: 32, 32>}, {pipeline_mode = #tpu.pipeline_mode<synchronous>, transform_indices = @transform_5, window_bounds = array<i64: 1, 32>}, {pipeline_mode = #tpu.pipeline_mode<synchronous>, transform_indices = @transform_6, window_bounds = array<i64: 1, 32>}, {pipeline_mode = #tpu.pipeline_mode<synchronous>, transform_indices = @transform_7, window_bounds = array<i64: 1, 32>}, {pipeline_mode = #tpu.pipeline_mode<synchronous>, transform_indices = @transform_8, window_bounds = array<i64: 32, 32>}, {pipeline_mode = #tpu.pipeline_mode<synchronous>, transform_indices = @transform_9, window_bounds = array<i64: 1, 32>}, {pipeline_mode = #tpu.pipeline_mode<synchronous>, transform_indices = @transform_10, window_bounds = array<i64: 1, 32>}, {pipeline_mode = #tpu.pipeline_mode<synchronous>, transform_indices = @transform_11, window_bounds = array<i64: 1, 32>}, {transform_indices = @transform_12, window_bounds = array<i64: 1, 8, 32>}]} {
    %c0 = arith.constant 0 : index
    %c0_0 = arith.constant 0 : index
    %c0_1 = arith.constant 0 : index
    %0 = vector.load %arg2[%c0, %c0_0, %c0_1] : memref<1x8x32xf32, #tpu.memory_space<vmem>>, vector<1x8x32xf32>
    %1 = vector.shape_cast %0 : vector<1x8x32xf32> to vector<8x32xf32>
    %c0_2 = arith.constant 0 : index
    %c0_3 = arith.constant 0 : index
    %c0_4 = arith.constant 0 : index
    %2 = vector.load %arg3[%c0_2, %c0_3, %c0_4] : memref<1x8x32xf32, #tpu.memory_space<vmem>>, vector<1x8x32xf32>
    %3 = vector.shape_cast %2 : vector<1x8x32xf32> to vector<8x32xf32>
    %c0_5 = arith.constant 0 : index
    %c0_6 = arith.constant 0 : index
    %4 = vector.load %arg4[%c0_5, %c0_6] : memref<32x32xf32, #tpu.memory_space<vmem>>, vector<32x32xf32>
    %c0_7 = arith.constant 0 : index
    %c0_8 = arith.constant 0 : index
    %5 = vector.load %arg5[%c0_7, %c0_8] : memref<32x32xf32, #tpu.memory_space<vmem>>, vector<32x32xf32>
    %c0_9 = arith.constant 0 : index
    %c0_10 = arith.constant 0 : index
    %6 = vector.load %arg6[%c0_9, %c0_10] : memref<32x32xf32, #tpu.memory_space<vmem>>, vector<32x32xf32>
    %c0_11 = arith.constant 0 : index
    %c0_12 = arith.constant 0 : index
    %7 = vector.load %arg7[%c0_11, %c0_12] : memref<1x32xf32, #tpu.memory_space<vmem>>, vector<1x32xf32>
    %c0_13 = arith.constant 0 : index
    %c0_14 = arith.constant 0 : index
    %8 = vector.load %arg8[%c0_13, %c0_14] : memref<1x32xf32, #tpu.memory_space<vmem>>, vector<1x32xf32>
    %c0_15 = arith.constant 0 : index
    %c0_16 = arith.constant 0 : index
    %9 = vector.load %arg9[%c0_15, %c0_16] : memref<1x32xf32, #tpu.memory_space<vmem>>, vector<1x32xf32>
    %c0_17 = arith.constant 0 : index
    %c0_18 = arith.constant 0 : index
    %10 = vector.load %arg10[%c0_17, %c0_18] : memref<32x32xf32, #tpu.memory_space<vmem>>, vector<32x32xf32>
    %c0_19 = arith.constant 0 : index
    %c0_20 = arith.constant 0 : index
    %11 = vector.load %arg11[%c0_19, %c0_20] : memref<1x32xf32, #tpu.memory_space<vmem>>, vector<1x32xf32>
    %cst = arith.constant dense<0.000000e+00> : vector<8x32xf32>
    %12 = tpu.matmul %1, %4, %cst {dimension_numbers = #tpu.dot_dimension_numbers<[1], [0], [0], [1], [0, 0, 1, 1], [], []>} : vector<8x32xf32>, vector<32x32xf32>, vector<8x32xf32> -> vector<8x32xf32>
    %13 = vector.broadcast %7 : vector<1x32xf32> to vector<8x32xf32>
    %14 = arith.addf %12, %13 : vector<8x32xf32>
    %cst_21 = arith.constant dense<0.000000e+00> : vector<8x32xf32>
    %15 = tpu.matmul %3, %5, %cst_21 {dimension_numbers = #tpu.dot_dimension_numbers<[1], [0], [0], [1], [0, 0, 1, 1], [], []>} : vector<8x32xf32>, vector<32x32xf32>, vector<8x32xf32> -> vector<8x32xf32>
    %16 = vector.broadcast %8 : vector<1x32xf32> to vector<8x32xf32>
    %17 = arith.addf %15, %16 : vector<8x32xf32>
    %cst_22 = arith.constant dense<0.000000e+00> : vector<8x32xf32>
    %18 = tpu.matmul %3, %6, %cst_22 {dimension_numbers = #tpu.dot_dimension_numbers<[1], [0], [0], [1], [0, 0, 1, 1], [], []>} : vector<8x32xf32>, vector<32x32xf32>, vector<8x32xf32> -> vector<8x32xf32>
    %19 = vector.broadcast %9 : vector<1x32xf32> to vector<8x32xf32>
    %20 = arith.addf %18, %19 : vector<8x32xf32>
    %21 = vector.shape_cast %14 : vector<8x32xf32> to vector<8x4x8xf32>
    %22 = tpu.transpose %21, [1, 0, 2] : vector<8x4x8xf32> -> vector<4x8x8xf32>
    %23 = vector.shape_cast %17 : vector<8x32xf32> to vector<8x4x8xf32>
    %24 = tpu.transpose %23, [1, 0, 2] : vector<8x4x8xf32> -> vector<4x8x8xf32>
    %25 = vector.shape_cast %20 : vector<8x32xf32> to vector<8x4x8xf32>
    %26 = tpu.transpose %25, [1, 0, 2] : vector<8x4x8xf32> -> vector<4x8x8xf32>
    "tpu.trace_start"() <{level = 10 : i32, message = "hqd,hkd->hqk"}> : () -> ()
    %cst_23 = arith.constant dense<0.000000e+00> : vector<4x8x8xf32>
    %27 = tpu.matmul %22, %24, %cst_23 {dimension_numbers = #tpu.dot_dimension_numbers<[2], [2], [1], [1], [0, 0, 0, 1, 1, 1], [0], [0]>} : vector<4x8x8xf32>, vector<4x8x8xf32>, vector<4x8x8xf32> -> vector<4x8x8xf32>
    "tpu.trace_stop"() : () -> ()
    %cst_24 = arith.constant dense<0xFF800000> : vector<4x8xf32>
    %28 = vector.multi_reduction <maximumf>, %27, %cst_24 [2] : vector<4x8x8xf32> to vector<4x8xf32>
    %29 = vector.shape_cast %28 : vector<4x8xf32> to vector<4x8x1xf32>
    %30 = vector.broadcast %29 : vector<4x8x1xf32> to vector<4x8x8xf32>
    %31 = arith.subf %27, %30 : vector<4x8x8xf32>
    %32 = math.exp %31 : vector<4x8x8xf32>
    %cst_25 = arith.constant dense<0.000000e+00> : vector<4x8xf32>
    %33 = vector.multi_reduction <add>, %32, %cst_25 [2] : vector<4x8x8xf32> to vector<4x8xf32>
    %34 = vector.shape_cast %33 : vector<4x8xf32> to vector<4x8x1xf32>
    %cst_26 = arith.constant 1.000000e+00 : f32
    %35 = vector.broadcast %cst_26 : f32 to vector<4x8x1xf32>
    %36 = arith.divf %35, %34 : vector<4x8x1xf32>
    %37 = vector.broadcast %36 : vector<4x8x1xf32> to vector<4x8x8xf32>
    %38 = arith.mulf %32, %37 : vector<4x8x8xf32>
    "tpu.trace_start"() <{level = 10 : i32, message = "hqk,hkd->hqd"}> : () -> ()
    %cst_27 = arith.constant dense<0.000000e+00> : vector<4x8x8xf32>
    %39 = tpu.matmul %38, %26, %cst_27 {dimension_numbers = #tpu.dot_dimension_numbers<[2], [1], [1], [2], [0, 0, 0, 1, 1, 2], [0], [0]>} : vector<4x8x8xf32>, vector<4x8x8xf32>, vector<4x8x8xf32> -> vector<4x8x8xf32>
    "tpu.trace_stop"() : () -> ()
    %40 = tpu.transpose %39, [1, 0, 2] : vector<4x8x8xf32> -> vector<8x4x8xf32>
    %41 = vector.shape_cast %40 : vector<8x4x8xf32> to vector<8x32xf32>
    %cst_28 = arith.constant dense<0.000000e+00> : vector<8x32xf32>
    %42 = tpu.matmul %41, %10, %cst_28 {dimension_numbers = #tpu.dot_dimension_numbers<[1], [0], [0], [1], [0, 0, 1, 1], [], []>} : vector<8x32xf32>, vector<32x32xf32>, vector<8x32xf32> -> vector<8x32xf32>
    %43 = vector.broadcast %11 : vector<1x32xf32> to vector<8x32xf32>
    %44 = arith.addf %42, %43 : vector<8x32xf32>
    %c0_29 = arith.constant 0 : index
    %c0_30 = arith.constant 0 : index
    %45 = vector.load %arg12[%c0_29, %c0_30] : memref<1x32xf32, #tpu.memory_space<vmem>>, vector<1x32xf32>
    %c0_31 = arith.constant 0 : index
    %c0_32 = arith.constant 0 : index
    %46 = vector.load %arg13[%c0_31, %c0_32] : memref<1x32xf32, #tpu.memory_space<vmem>>, vector<1x32xf32>
    %cst_33 = arith.constant dense<0.000000e+00> : vector<8xf32>
    %47 = vector.multi_reduction <add>, %44, %cst_33 [1] : vector<8x32xf32> to vector<8xf32>
    %48 = vector.shape_cast %47 : vector<8xf32> to vector<8x1xf32>
    %cst_34 = arith.constant 3.200000e+01 : f32
    %49 = vector.broadcast %cst_34 : f32 to vector<8x1xf32>
    %50 = arith.divf %48, %49 : vector<8x1xf32>
    %51 = vector.broadcast %50 : vector<8x1xf32> to vector<8x32xf32>
    %52 = arith.subf %44, %51 : vector<8x32xf32>
    %53 = arith.mulf %52, %52 : vector<8x32xf32>
    %cst_35 = arith.constant dense<0.000000e+00> : vector<8xf32>
    %54 = vector.multi_reduction <add>, %53, %cst_35 [1] : vector<8x32xf32> to vector<8xf32>
    %55 = vector.shape_cast %54 : vector<8xf32> to vector<8x1xf32>
    %cst_36 = arith.constant 3.200000e+01 : f32
    %56 = vector.broadcast %cst_36 : f32 to vector<8x1xf32>
    %57 = arith.divf %55, %56 : vector<8x1xf32>
    %58 = vector.broadcast %50 : vector<8x1xf32> to vector<8x32xf32>
    %59 = arith.subf %44, %58 : vector<8x32xf32>
    %cst_37 = arith.constant 9.99999974E-6 : f32
    %60 = vector.broadcast %cst_37 : f32 to vector<8x1xf32>
    %61 = arith.addf %57, %60 : vector<8x1xf32>
    %62 = math.rsqrt %61 : vector<8x1xf32>
    %63 = vector.broadcast %62 : vector<8x1xf32> to vector<8x32xf32>
    %64 = arith.mulf %59, %63 : vector<8x32xf32>
    %65 = vector.broadcast %45 : vector<1x32xf32> to vector<8x32xf32>
    %66 = arith.mulf %64, %65 : vector<8x32xf32>
    %67 = vector.broadcast %46 : vector<1x32xf32> to vector<8x32xf32>
    %68 = arith.addf %66, %67 : vector<8x32xf32>
    %69 = arith.addf %68, %1 : vector<8x32xf32>
    %c0_38 = arith.constant 0 : index
    %c0_39 = arith.constant 0 : index
    %c0_40 = arith.constant 0 : index
    %70 = vector.load %arg14[%c0_38, %c0_39, %c0_40] : memref<1x8x32xf32, #tpu.memory_space<vmem>>, vector<1x8x32xf32>
    %71 = vector.shape_cast %70 : vector<1x8x32xf32> to vector<8x32xf32>
    %72 = vector.shape_cast %69 : vector<8x32xf32> to vector<1x8x32xf32>
    tpu.vector_store %arg14[%c0_38, %c0_39, %c0_40], %72 {strides = array<i32>} : memref<1x8x32xf32, #tpu.memory_space<vmem>>, vector<1x8x32xf32>,
    return
  }
  func.func @transform_0(%arg0: i32, %arg1: i32) -> (i32, i32, i32) {
    %c0_i32 = arith.constant 0 : i32
    %c0_i32_0 = arith.constant 0 : i32
    return %arg0, %arg1, %c0_i32 : i32, i32, i32
  }
  func.func @transform_1(%arg0: i32, %arg1: i32) -> (i32, i32, i32) {
    %c0_i32 = arith.constant 0 : i32
    %c0_i32_0 = arith.constant 0 : i32
    %c0_i32_1 = arith.constant 0 : i32
    return %arg0, %c0_i32, %c0_i32_0 : i32, i32, i32
  }
  func.func @transform_2(%arg0: i32, %arg1: i32) -> (i32, i32) {
    %c0_i32 = arith.constant 0 : i32
    %c0_i32_0 = arith.constant 0 : i32
    %c0_i32_1 = arith.constant 0 : i32
    return %c0_i32, %c0_i32_0 : i32, i32
  }
  func.func @transform_3(%arg0: i32, %arg1: i32) -> (i32, i32) {
    %c0_i32 = arith.constant 0 : i32
    %c0_i32_0 = arith.constant 0 : i32
    %c0_i32_1 = arith.constant 0 : i32
    return %c0_i32, %c0_i32_0 : i32, i32
  }
  func.func @transform_4(%arg0: i32, %arg1: i32) -> (i32, i32) {
    %c0_i32 = arith.constant 0 : i32
    %c0_i32_0 = arith.constant 0 : i32
    %c0_i32_1 = arith.constant 0 : i32
    return %c0_i32, %c0_i32_0 : i32, i32
  }
  func.func @transform_5(%arg0: i32, %arg1: i32) -> (i32, i32) {
    %c0_i32 = arith.constant 0 : i32
    %c0_i32_0 = arith.constant 0 : i32
    %c0_i32_1 = arith.constant 0 : i32
    return %c0_i32, %c0_i32_0 : i32, i32
  }
  func.func @transform_6(%arg0: i32, %arg1: i32) -> (i32, i32) {
    %c0_i32 = arith.constant 0 : i32
    %c0_i32_0 = arith.constant 0 : i32
    %c0_i32_1 = arith.constant 0 : i32
    return %c0_i32, %c0_i32_0 : i32, i32
  }
  func.func @transform_7(%arg0: i32, %arg1: i32) -> (i32, i32) {
    %c0_i32 = arith.constant 0 : i32
    %c0_i32_0 = arith.constant 0 : i32
    %c0_i32_1 = arith.constant 0 : i32
    return %c0_i32, %c0_i32_0 : i32, i32
  }
  func.func @transform_8(%arg0: i32, %arg1: i32) -> (i32, i32) {
    %c0_i32 = arith.constant 0 : i32
    %c0_i32_0 = arith.constant 0 : i32
    %c0_i32_1 = arith.constant 0 : i32
    return %c0_i32, %c0_i32_0 : i32, i32
  }
  func.func @transform_9(%arg0: i32, %arg1: i32) -> (i32, i32) {
    %c0_i32 = arith.constant 0 : i32
    %c0_i32_0 = arith.constant 0 : i32
    %c0_i32_1 = arith.constant 0 : i32
    return %c0_i32, %c0_i32_0 : i32, i32
  }
  func.func @transform_10(%arg0: i32, %arg1: i32) -> (i32, i32) {
    %c0_i32 = arith.constant 0 : i32
    %c0_i32_0 = arith.constant 0 : i32
    %c0_i32_1 = arith.constant 0 : i32
    return %c0_i32, %c0_i32_0 : i32, i32
  }
  func.func @transform_11(%arg0: i32, %arg1: i32) -> (i32, i32) {
    %c0_i32 = arith.constant 0 : i32
    %c0_i32_0 = arith.constant 0 : i32
    %c0_i32_1 = arith.constant 0 : i32
    return %c0_i32, %c0_i32_0 : i32, i32
  }
  func.func @transform_12(%arg0: i32, %arg1: i32) -> (i32, i32, i32) {
    %c0_i32 = arith.constant 0 : i32
    %c0_i32_0 = arith.constant 0 : i32
    return %arg0, %arg1, %c0_i32 : i32, i32, i32
  }
}

</mosaic_0001>

<llo_original>
// kernel: tpu_custom_call.1
$region0: #{tpu_custom_call.1}
  #allocation0 [shape = 'u32[]', space=smem, size = 0x4, offset = 0x4, fixed_abs, tag = 'smem constant byte address 0x4 - core index']
  #allocation1 [shape = 'u32[144,128]{1,0:T(1,128)}', space=vmem, size = 0x12000, scoped, tag = 'internal scratch']
  %s0 = inlined_call_operand.hbm [shape: f32[2,8,32], index: 0, kind: input, shape index: {}]
  %s1 = inlined_call_operand.hbm [shape: f32[2,8,32], index: 1, kind: input, shape index: {}]
  %s2 = inlined_call_operand.hbm [shape: f32[32,32], index: 2, kind: input, shape index: {}]
  %s3 = inlined_call_operand.hbm [shape: f32[32,32], index: 3, kind: input, shape index: {}]
  %s4 = inlined_call_operand.hbm [shape: f32[32,32], index: 4, kind: input, shape index: {}]
  %s5 = inlined_call_operand.vmem [shape: f32[1,32], index: 5, kind: input, shape index: {}]
  %s6 = inlined_call_operand.vmem [shape: f32[1,32], index: 6, kind: input, shape index: {}]
  %s7 = inlined_call_operand.vmem [shape: f32[1,32], index: 7, kind: input, shape index: {}]
  %s8 = inlined_call_operand.hbm [shape: f32[32,32], index: 8, kind: input, shape index: {}]
  %s9 = inlined_call_operand.vmem [shape: f32[1,32], index: 9, kind: input, shape index: {}]
  %s10 = inlined_call_operand.vmem [shape: f32[1,32], index: 10, kind: input, shape index: {}]
  %s11 = inlined_call_operand.vmem [shape: f32[1,32], index: 11, kind: input, shape index: {}]
  %s12 = inlined_call_operand.hbm [shape: f32[2,8,32], index: 12, kind: output, shape index: {}]
  %s13 = sld [smem:[#allocation0]]
  $region105: #{tpu_custom_call.1} parent=0
    _
  %s15 = ssub.s32 1, %s13
  %s16 = scalar_select 0, %s15, %s13
  $region1: #{tpu_custom_call.1} parent=0
    #allocation2 [shape = 'u8[8192]{0}', space=vmem, size = 0x2000, scoped, tag = 'input window, operand 0']
    #allocation3 [shape = 's32[2]{0}', space=sflag, size = 0x8, scoped, tag = 'scoped memory for tpu_custom_call.1']
    #allocation4 [shape = 's32[2]{0}', space=sflag, size = 0x8, scoped, tag = 'scoped memory for tpu_custom_call.1']
    #allocation5 [shape = 'u8[8192]{0}', space=vmem, size = 0x2000, scoped, tag = 'input window, operand 1']
    #allocation6 [shape = 's32[2]{0}', space=sflag, size = 0x8, scoped, tag = 'scoped memory for tpu_custom_call.1']
    #allocation7 [shape = 'u8[16384]{0}', space=vmem, size = 0x4000, scoped, tag = 'input window, operand 2, single buffered']
    #allocation8 [shape = 'u8[16384]{0}', space=vmem, size = 0x4000, scoped, tag = 'input window, operand 3, single buffered']
    #allocation9 [shape = 's32[1]{0}', space=sflag, size = 0x4, scoped, tag = 'scoped memory for tpu_custom_call.1']
    #allocation10 [shape = 'u8[16384]{0}', space=vmem, size = 0x4000, scoped, tag = 'input window, operand 4, single buffered']
    #allocation11 [shape = 'u8[16384]{0}', space=vmem, size = 0x4000, scoped, tag = 'input window, operand 8, single buffered']
    #allocation12 [shape = 's32[1]{0}', space=sflag, size = 0x4, scoped, tag = 'scoped memory for tpu_custom_call.1']
    #allocation13 [shape = 'u8[8192]{0}', space=vmem, size = 0x2000, scoped, tag = 'output window, operand 0']
    %17 = vsyncpa [#allocation3], 0
    %s18 = scalar_lea.sflag [#allocation3], 1
    %19 = vsyncpa %s18, 0
    %20 = vsyncpa [#allocation6], 0
    %s21 = scalar_lea.sflag [#allocation6], 1
    %22 = vsyncpa %s21, 0
    %23 = vsyncpa [#allocation9], 0
    %24 = vsyncpa [#allocation12], 0
    %25 = vsyncpa [#allocation4], 0
    %s26 = scalar_lea.sflag [#allocation4], 1
    %27 = vsyncpa %s26, 0
    loop: start=0, step=1, limit=4
    $region2: #{tpu_custom_call.1} parent=1 // loop_pre_header
      _
    $region3: #{tpu_custom_call.1} parent=1 // loop_header
      %s29 = sphi 0, %s33
      %p30 = scmp.ge.s32.totalorder %s29, 4
      %s36 = sphi 0, %s48
      %s37 = sphi 0, %s44
      %s38 = sphi 0, %s36
      %s39 = sphi 0, %s37
      %s40 = sphi 0, %s38
      %s41 = sphi 0, %s39
      %s53 = sphi 0, %s55
      %s56 = sphi 0, %s53
      %s57 = sphi 0, %s56
      %s73 = sphi 0, %s57
      %s79 = sphi 0, %s81
      %s82 = sphi 0, %s79
      %s83 = sphi 0, %s82
      %s99 = sphi 0, %s83
      %s103 = sphi 0, %s103
      %s105 = sphi 0, %s103
      %s106 = sphi 0, %s105
      %s120 = sphi 0, %s106
      %s124 = sphi 0, %s124
      %s126 = sphi 0, %s124
      %s127 = sphi 0, %s126
      %s141 = sphi 0, %s127
      %s145 = sphi 0, %s145
      %s147 = sphi 0, %s145
      %s148 = sphi 0, %s147
      %s162 = sphi 0, %s148
      %s166 = sphi 0, %s166
      %s168 = sphi 0, %s166
      %s169 = sphi 0, %s168
      %s183 = sphi 0, %s169
      %s187 = sphi 0, %s187
      %s189 = sphi 0, %s187
      %s190 = sphi 0, %s189
      %s204 = sphi 0, %s190
      %s208 = sphi 0, %s208
      %s210 = sphi 0, %s208
      %s211 = sphi 0, %s210
      %s225 = sphi 0, %s211
      %s229 = sphi 0, %s229
      %s231 = sphi 0, %s229
      %s232 = sphi 0, %s231
      %s246 = sphi 0, %s232
      %s250 = sphi 0, %s250
      %s252 = sphi 0, %s250
      %s253 = sphi 0, %s252
      %s267 = sphi 0, %s253
      %s271 = sphi 0, %s271
      %s273 = sphi 0, %s271
      %s274 = sphi 0, %s273
      %s288 = sphi 0, %s274
      %s292 = sphi 0, %s292
      %s294 = sphi 0, %s292
      %s295 = sphi 0, %s294
      %s309 = sphi 0, %s295
      %s317 = sphi 0, %s319
      %s320 = sphi 0, %s317
      %s321 = sphi 0, %s320
      %s337 = sphi 0, %s321
    $region4: #{tpu_custom_call.1} parent=1 // loop_header_branch
      %32 = sbr.rel (%p30) target = $region8
    $region5: #{tpu_custom_call.1} parent=1 // loop_body
      %s34 = ssub.s32 %s29, 1
      %s35 = ssub.s32 %s29, 2
      %s42 = sadd.s32 1, %s37
      %p43 = scmp.ge.s32.totalorder %s42, 1
      %s44 = scalar_select %p43, 0, %s42
      %s45 = sadd.s32 1, %s36
      %s46 = scalar_select %p43, %s45, %s36
      %p47 = scmp.ge.s32.totalorder %s46, 2
      %s48 = scalar_select %p47, 0, %s46
      %s49 = ssub.s32 %s36, %s48
      %s50 = ssub.s32 %s37, %s44
      %s51 = sor.u32 %s49, %s50
      %p52 = scmp.eq.s32.totalorder %s51, 0
      %s54 = sadd.s32 %s53, 1
      %s55 = scalar_select %p52, %s53, %s54
      %p58 = pneg %p52
      %p59 = scmp.eq.s32.totalorder %s29, 1
      %p60 = por %p58, %p59
      %p61 = scmp.ne.s32.totalorder %s53, %s56
      %p62 = scmp.eq.s32.totalorder %s29, 0
      %p63 = por %p61, %p62
      %p64 = scmp.ne.s32.totalorder %s53, %s56
      %p65 = scmp.eq.s32.totalorder %s34, 1
      %p66 = por %p64, %p65
      %p67 = scmp.ne.s32.totalorder %s56, %s57
      %p68 = scmp.eq.s32.totalorder %s34, 0
      %p69 = por %p67, %p68
      %p70 = scmp.ne.s32.totalorder %s56, %s57
      %p71 = scmp.eq.s32.totalorder %s35, 1
      %p72 = por %p70, %p71
      %p74 = scmp.ne.s32.totalorder %s57, %s73
      %p75 = scmp.eq.s32.totalorder %s35, 0
      %p76 = por %p74, %p75
      %s77 = ssub.s32 %s36, %s48
      %p78 = scmp.eq.s32.totalorder %s77, 0
      %s80 = sadd.s32 %s79, 1
      %s81 = scalar_select %p78, %s79, %s80
      %p84 = pneg %p78
      %p85 = scmp.eq.s32.totalorder %s29, 1
      %p86 = por %p84, %p85
      %p87 = scmp.ne.s32.totalorder %s79, %s82
      %p88 = scmp.eq.s32.totalorder %s29, 0
      %p89 = por %p87, %p88
      %p90 = scmp.ne.s32.totalorder %s79, %s82
      %p91 = scmp.eq.s32.totalorder %s34, 1
      %p92 = por %p90, %p91
      %p93 = scmp.ne.s32.totalorder %s82, %s83
      %p94 = scmp.eq.s32.totalorder %s34, 0
      %p95 = por %p93, %p94
      %p96 = scmp.ne.s32.totalorder %s82, %s83
      %p97 = scmp.eq.s32.totalorder %s35, 1
      %p98 = por %p96, %p97
      %p100 = scmp.ne.s32.totalorder %s83, %s99
      %p101 = scmp.eq.s32.totalorder %s35, 0
      %p102 = por %p100, %p101
      %s104 = sadd.s32 %s103, 1
      %p107 = scmp.eq.s32.totalorder %s29, 1
      %p108 = scmp.ne.s32.totalorder %s103, %s105
      %p109 = scmp.eq.s32.totalorder %s29, 0
      %p110 = por %p108, %p109
      %p111 = scmp.ne.s32.totalorder %s103, %s105
      %p112 = scmp.eq.s32.totalorder %s34, 1
      %p113 = por %p111, %p112
      %p114 = scmp.ne.s32.totalorder %s105, %s106
      %p115 = scmp.eq.s32.totalorder %s34, 0
      %p116 = por %p114, %p115
      %p117 = scmp.ne.s32.totalorder %s105, %s106
      %p118 = scmp.eq.s32.totalorder %s35, 1
      %p119 = por %p117, %p118
      %p121 = scmp.ne.s32.totalorder %s106, %s120
      %p122 = scmp.eq.s32.totalorder %s35, 0
      %p123 = por %p121, %p122
      %s125 = sadd.s32 %s124, 1
      %p128 = scmp.eq.s32.totalorder %s29, 1
      %p129 = scmp.ne.s32.totalorder %s124, %s126
      %p130 = scmp.eq.s32.totalorder %s29, 0
      %p131 = por %p129, %p130
      %p132 = scmp.ne.s32.totalorder %s124, %s126
      %p133 = scmp.eq.s32.totalorder %s34, 1
      %p134 = por %p132, %p133
      %p135 = scmp.ne.s32.totalorder %s126, %s127
      %p136 = scmp.eq.s32.totalorder %s34, 0
      %p137 = por %p135, %p136
      %p138 = scmp.ne.s32.totalorder %s126, %s127
      %p139 = scmp.eq.s32.totalorder %s35, 1
      %p140 = por %p138, %p139
      %p142 = scmp.ne.s32.totalorder %s127, %s141
      %p143 = scmp.eq.s32.totalorder %s35, 0
      %p144 = por %p142, %p143
      %s146 = sadd.s32 %s145, 1
      %p149 = scmp.eq.s32.totalorder %s29, 1
      %p150 = scmp.ne.s32.totalorder %s145, %s147
      %p151 = scmp.eq.s32.totalorder %s29, 0
      %p152 = por %p150, %p151
      %p153 = scmp.ne.s32.totalorder %s145, %s147
      %p154 = scmp.eq.s32.totalorder %s34, 1
      %p155 = por %p153, %p154
      %p156 = scmp.ne.s32.totalorder %s147, %s148
      %p157 = scmp.eq.s32.totalorder %s34, 0
      %p158 = por %p156, %p157
      %p159 = scmp.ne.s32.totalorder %s147, %s148
      %p160 = scmp.eq.s32.totalorder %s35, 1
      %p161 = por %p159, %p160
      %p163 = scmp.ne.s32.totalorder %s148, %s162
      %p164 = scmp.eq.s32.totalorder %s35, 0
      %p165 = por %p163, %p164
      %s167 = sadd.s32 %s166, 1
      %p170 = scmp.eq.s32.totalorder %s29, 1
      %p171 = scmp.ne.s32.totalorder %s166, %s168
      %p172 = scmp.eq.s32.totalorder %s29, 0
      %p173 = por %p171, %p172
      %p174 = scmp.ne.s32.totalorder %s166, %s168
      %p175 = scmp.eq.s32.totalorder %s34, 1
      %p176 = por %p174, %p175
      %p177 = scmp.ne.s32.totalorder %s168, %s169
      %p178 = scmp.eq.s32.totalorder %s34, 0
      %p179 = por %p177, %p178
      %p180 = scmp.ne.s32.totalorder %s168, %s169
      %p181 = scmp.eq.s32.totalorder %s35, 1
      %p182 = por %p180, %p181
      %p184 = scmp.ne.s32.totalorder %s169, %s183
      %p185 = scmp.eq.s32.totalorder %s35, 0
      %p186 = por %p184, %p185
      %s188 = sadd.s32 %s187, 1
      %p191 = scmp.eq.s32.totalorder %s29, 1
      %p192 = scmp.ne.s32.totalorder %s187, %s189
      %p193 = scmp.eq.s32.totalorder %s29, 0
      %p194 = por %p192, %p193
      %p195 = scmp.ne.s32.totalorder %s187, %s189
      %p196 = scmp.eq.s32.totalorder %s34, 1
      %p197 = por %p195, %p196
      %p198 = scmp.ne.s32.totalorder %s189, %s190
      %p199 = scmp.eq.s32.totalorder %s34, 0
      %p200 = por %p198, %p199
      %p201 = scmp.ne.s32.totalorder %s189, %s190
      %p202 = scmp.eq.s32.totalorder %s35, 1
      %p203 = por %p201, %p202
      %p205 = scmp.ne.s32.totalorder %s190, %s204
      %p206 = scmp.eq.s32.totalorder %s35, 0
      %p207 = por %p205, %p206
      %s209 = sadd.s32 %s208, 1
      %p212 = scmp.eq.s32.totalorder %s29, 1
      %p213 = scmp.ne.s32.totalorder %s208, %s210
      %p214 = scmp.eq.s32.totalorder %s29, 0
      %p215 = por %p213, %p214
      %p216 = scmp.ne.s32.totalorder %s208, %s210
      %p217 = scmp.eq.s32.totalorder %s34, 1
      %p218 = por %p216, %p217
      %p219 = scmp.ne.s32.totalorder %s210, %s211
      %p220 = scmp.eq.s32.totalorder %s34, 0
      %p221 = por %p219, %p220
      %p222 = scmp.ne.s32.totalorder %s210, %s211
      %p223 = scmp.eq.s32.totalorder %s35, 1
      %p224 = por %p222, %p223
      %p226 = scmp.ne.s32.totalorder %s211, %s225
      %p227 = scmp.eq.s32.totalorder %s35, 0
      %p228 = por %p226, %p227
      %s230 = sadd.s32 %s229, 1
      %p233 = scmp.eq.s32.totalorder %s29, 1
      %p234 = scmp.ne.s32.totalorder %s229, %s231
      %p235 = scmp.eq.s32.totalorder %s29, 0
      %p236 = por %p234, %p235
      %p237 = scmp.ne.s32.totalorder %s229, %s231
      %p238 = scmp.eq.s32.totalorder %s34, 1
      %p239 = por %p237, %p238
      %p240 = scmp.ne.s32.totalorder %s231, %s232
      %p241 = scmp.eq.s32.totalorder %s34, 0
      %p242 = por %p240, %p241
      %p243 = scmp.ne.s32.totalorder %s231, %s232
      %p244 = scmp.eq.s32.totalorder %s35, 1
      %p245 = por %p243, %p244
      %p247 = scmp.ne.s32.totalorder %s232, %s246
      %p248 = scmp.eq.s32.totalorder %s35, 0
      %p249 = por %p247, %p248
      %s251 = sadd.s32 %s250, 1
      %p254 = scmp.eq.s32.totalorder %s29, 1
      %p255 = scmp.ne.s32.totalorder %s250, %s252
      %p256 = scmp.eq.s32.totalorder %s29, 0
      %p257 = por %p255, %p256
      %p258 = scmp.ne.s32.totalorder %s250, %s252
      %p259 = scmp.eq.s32.totalorder %s34, 1
      %p260 = por %p258, %p259
      %p261 = scmp.ne.s32.totalorder %s252, %s253
      %p262 = scmp.eq.s32.totalorder %s34, 0
      %p263 = por %p261, %p262
      %p264 = scmp.ne.s32.totalorder %s252, %s253
      %p265 = scmp.eq.s32.totalorder %s35, 1
      %p266 = por %p264, %p265
      %p268 = scmp.ne.s32.totalorder %s253, %s267
      %p269 = scmp.eq.s32.totalorder %s35, 0
      %p270 = por %p268, %p269
      %s272 = sadd.s32 %s271, 1
      %p275 = scmp.eq.s32.totalorder %s29, 1
      %p276 = scmp.ne.s32.totalorder %s271, %s273
      %p277 = scmp.eq.s32.totalorder %s29, 0
      %p278 = por %p276, %p277
      %p279 = scmp.ne.s32.totalorder %s271, %s273
      %p280 = scmp.eq.s32.totalorder %s34, 1
      %p281 = por %p279, %p280
      %p282 = scmp.ne.s32.totalorder %s273, %s274
      %p283 = scmp.eq.s32.totalorder %s34, 0
      %p284 = por %p282, %p283
      %p285 = scmp.ne.s32.totalorder %s273, %s274
      %p286 = scmp.eq.s32.totalorder %s35, 1
      %p287 = por %p285, %p286
      %p289 = scmp.ne.s32.totalorder %s274, %s288
      %p290 = scmp.eq.s32.totalorder %s35, 0
      %p291 = por %p289, %p290
      %s293 = sadd.s32 %s292, 1
      %p296 = scmp.eq.s32.totalorder %s29, 1
      %p297 = scmp.ne.s32.totalorder %s292, %s294
      %p298 = scmp.eq.s32.totalorder %s29, 0
      %p299 = por %p297, %p298
      %p300 = scmp.ne.s32.totalorder %s292, %s294
      %p301 = scmp.eq.s32.totalorder %s34, 1
      %p302 = por %p300, %p301
      %p303 = scmp.ne.s32.totalorder %s294, %s295
      %p304 = scmp.eq.s32.totalorder %s34, 0
      %p305 = por %p303, %p304
      %p306 = scmp.ne.s32.totalorder %s294, %s295
      %p307 = scmp.eq.s32.totalorder %s35, 1
      %p308 = por %p306, %p307
      %p310 = scmp.ne.s32.totalorder %s295, %s309
      %p311 = scmp.eq.s32.totalorder %s35, 0
      %p312 = por %p310, %p311
      %s313 = ssub.s32 %s36, %s48
      %s314 = ssub.s32 %s37, %s44
      %s315 = sor.u32 %s313, %s314
      %p316 = scmp.eq.s32.totalorder %s315, 0
      %s318 = sadd.s32 %s317, 1
      %s319 = scalar_select %p316, %s317, %s318
      %p322 = pneg %p316
      %p323 = scmp.eq.s32.totalorder %s29, 1
      %p324 = por %p322, %p323
      %p325 = scmp.ne.s32.totalorder %s317, %s320
      %p326 = scmp.eq.s32.totalorder %s29, 0
      %p327 = por %p325, %p326
      %p328 = scmp.ne.s32.totalorder %s317, %s320
      %p329 = scmp.eq.s32.totalorder %s34, 1
      %p330 = por %p328, %p329
      %p331 = scmp.ne.s32.totalorder %s320, %s321
      %p332 = scmp.eq.s32.totalorder %s34, 0
      %p333 = por %p331, %p332
      %p334 = scmp.ne.s32.totalorder %s320, %s321
      %p335 = scmp.eq.s32.totalorder %s35, 1
      %p336 = por %p334, %p335
      %p338 = scmp.ne.s32.totalorder %s321, %s337
      %p339 = scmp.eq.s32.totalorder %s35, 0
      %p340 = por %p338, %p339
      %p341 = scmp.le.s32.totalorder 1, %s29
      %p342 = scmp.lt.s32.totalorder %s29, 3
      %p343 = pnand %p341, %p342
      %p344 = pneg %p343
      // Predicated region
      $region9: #{tpu_custom_call.1} parent=5 // pred_check
        _
      $region10: #{tpu_custom_call.1} parent=5 // pred_check_branch
        %346 = sbr.rel (%p343) target = $region12
      $region11: #{tpu_custom_call.1} parent=5 // pred_region
        %s347 = ssub.s32 %s29, 1
        // Predicated region
        $region13: #{tpu_custom_call.1} parent=11 // pred_check
          %p348 = pneg %p116
        $region14: #{tpu_custom_call.1} parent=11 // pred_check_branch
          %350 = sbr.rel (%p348) target = $region16
        $region15: #{tpu_custom_call.1} parent=11 // pred_region
          %s352 = ssub.s32 512, 512
          %353 = vsyncadd [#allocation6], %s352
          %s354 = sshll.u32 [#allocation7], 4
          %s355 = int_to_ptr.vmem [resolvable:$true] %s354
          %360 = dma.hbm_to_vmem [thread:$0]  %s2, 512, %s355, [#allocation6], 128, 128, 8
        $region16: #{tpu_custom_call.1} parent=11 // pred_fallthru
          _
        // Predicated region
        $region17: #{tpu_custom_call.1} parent=11 // pred_check
          %p361 = pneg %p137
        $region18: #{tpu_custom_call.1} parent=11 // pred_check_branch
          %363 = sbr.rel (%p361) target = $region20
        $region19: #{tpu_custom_call.1} parent=11 // pred_region
          %s365 = ssub.s32 512, 512
          %366 = vsyncadd [#allocation9], %s365
          %s367 = sshll.u32 [#allocation8], 4
          %s368 = int_to_ptr.vmem [resolvable:$true] %s367
          %373 = dma.hbm_to_vmem [thread:$0]  %s3, 512, %s368, [#allocation9], 128, 128, 8
        $region20: #{tpu_custom_call.1} parent=11 // pred_fallthru
          _
        // Predicated region
        $region21: #{tpu_custom_call.1} parent=11 // pred_check
          %p374 = pneg %p158
        $region22: #{tpu_custom_call.1} parent=11 // pred_check_branch
          %376 = sbr.rel (%p374) target = $region24
        $region23: #{tpu_custom_call.1} parent=11 // pred_region
          %s378 = ssub.s32 512, 512
          %379 = vsyncadd [#allocation9], %s378
          %s380 = sshll.u32 [#allocation10], 4
          %s381 = int_to_ptr.vmem [resolvable:$true] %s380
          %386 = dma.hbm_to_vmem [thread:$0]  %s4, 512, %s381, [#allocation9], 128, 128, 8
        $region24: #{tpu_custom_call.1} parent=11 // pred_fallthru
          _
        // Predicated region
        $region25: #{tpu_custom_call.1} parent=11 // pred_check
          %p387 = pneg %p179
        $region26: #{tpu_custom_call.1} parent=11 // pred_check_branch
          %389 = sbr.rel (%p387) target = $region28
        $region27: #{tpu_custom_call.1} parent=11 // pred_region
          _
        $region28: #{tpu_custom_call.1} parent=11 // pred_fallthru
          _
        // Predicated region
        $region29: #{tpu_custom_call.1} parent=11 // pred_check
          %p390 = pneg %p200
        $region30: #{tpu_custom_call.1} parent=11 // pred_check_branch
          %392 = sbr.rel (%p390) target = $region32
        $region31: #{tpu_custom_call.1} parent=11 // pred_region
          _
        $region32: #{tpu_custom_call.1} parent=11 // pred_fallthru
          _
        // Predicated region
        $region33: #{tpu_custom_call.1} parent=11 // pred_check
          %p393 = pneg %p221
        $region34: #{tpu_custom_call.1} parent=11 // pred_check_branch
          %395 = sbr.rel (%p393) target = $region36
        $region35: #{tpu_custom_call.1} parent=11 // pred_region
          _
        $region36: #{tpu_custom_call.1} parent=11 // pred_fallthru
          _
        // Predicated region
        $region37: #{tpu_custom_call.1} parent=11 // pred_check
          %p396 = pneg %p242
        $region38: #{tpu_custom_call.1} parent=11 // pred_check_branch
          %398 = sbr.rel (%p396) target = $region40
        $region39: #{tpu_custom_call.1} parent=11 // pred_region
          %s400 = ssub.s32 512, 512
          %401 = vsyncadd [#allocation12], %s400
          %s402 = sshll.u32 [#allocation11], 4
          %s403 = int_to_ptr.vmem [resolvable:$true] %s402
          %408 = dma.hbm_to_vmem [thread:$0]  %s8, 512, %s403, [#allocation12], 128, 128, 8
        $region40: #{tpu_custom_call.1} parent=11 // pred_fallthru
          _
        // Predicated region
        $region41: #{tpu_custom_call.1} parent=11 // pred_check
          %p409 = pneg %p263
        $region42: #{tpu_custom_call.1} parent=11 // pred_check_branch
          %411 = sbr.rel (%p409) target = $region44
        $region43: #{tpu_custom_call.1} parent=11 // pred_region
          _
        $region44: #{tpu_custom_call.1} parent=11 // pred_fallthru
          _
        // Predicated region
        $region45: #{tpu_custom_call.1} parent=11 // pred_check
          %p412 = pneg %p284
        $region46: #{tpu_custom_call.1} parent=11 // pred_check_branch
          %414 = sbr.rel (%p412) target = $region48
        $region47: #{tpu_custom_call.1} parent=11 // pred_region
          _
        $region48: #{tpu_custom_call.1} parent=11 // pred_fallthru
          _
        // Predicated region
        $region49: #{tpu_custom_call.1} parent=11 // pred_check
          %p415 = pneg %p305
        $region50: #{tpu_custom_call.1} parent=11 // pred_check_branch
          %417 = sbr.rel (%p415) target = $region52
        $region51: #{tpu_custom_call.1} parent=11 // pred_region
          _
        $region52: #{tpu_custom_call.1} parent=11 // pred_fallthru
          _
      $region12: #{tpu_custom_call.1} parent=5 // pred_fallthru
        _
      %p418 = scmp.lt.s32.totalorder %s29, 2
      // Predicated region
      $region53: #{tpu_custom_call.1} parent=5 // pred_check
        %p419 = pneg %p418
      $region54: #{tpu_custom_call.1} parent=5 // pred_check_branch
        %421 = sbr.rel (%p419) target = $region56
      $region55: #{tpu_custom_call.1} parent=5 // pred_region
        // Predicated region
        $region57: #{tpu_custom_call.1} parent=55 // pred_check
          %p422 = pneg %p63
        $region58: #{tpu_custom_call.1} parent=55 // pred_check_branch
          %424 = sbr.rel (%p422) target = $region60
        $region59: #{tpu_custom_call.1} parent=55 // pred_region
          %s425 = sand.u32 %s53, 1
          %s426 = scalar_lea.sflag [#allocation3], %s425
          %s427 = sand.u32 %s53, 1
          %s428 = smul.addr %s427, 8
          %s429 = scalar_lea.vmem [#allocation2], %s428
          %s431 = ssub.s32 128, 128
          %432 = vsyncadd %s426, %s431
          %s433 = sadd.s32 %s37, %s36
          %s434 = smul.addr %s433, 128
          %s435 = scalar_lea.hbm %s0, %s434
          %s437 = sshll.u32 %s429, 4
          %s438 = int_to_ptr.vmem [resolvable:$true] %s437
          %440 = dma.hbm_to_vmem [thread:$0]  %s435, 128, %s438, %s426
        $region60: #{tpu_custom_call.1} parent=55 // pred_fallthru
          _
        // Predicated region
        $region61: #{tpu_custom_call.1} parent=55 // pred_check
          %p441 = pneg %p89
        $region62: #{tpu_custom_call.1} parent=55 // pred_check_branch
          %443 = sbr.rel (%p441) target = $region64
        $region63: #{tpu_custom_call.1} parent=55 // pred_region
          %s444 = sand.u32 %s29, 1
          %s445 = scalar_lea.sflag [#allocation6], %s444
          %s446 = sand.u32 %s79, 1
          %s447 = smul.addr %s446, 8
          %s448 = scalar_lea.vmem [#allocation5], %s447
          %s450 = ssub.s32 128, 128
          %451 = vsyncadd %s445, %s450
          %s452 = smul.addr %s36, 128
          %s453 = scalar_lea.hbm %s1, %s452
          %s455 = sshll.u32 %s448, 4
          %s456 = int_to_ptr.vmem [resolvable:$true] %s455
          %458 = dma.hbm_to_vmem [thread:$0]  %s453, 128, %s456, %s445
        $region64: #{tpu_custom_call.1} parent=55 // pred_fallthru
          _
      $region56: #{tpu_custom_call.1} parent=5 // pred_fallthru
        _
      %p459 = scmp.le.s32.totalorder 1, %s29
      %p460 = scmp.lt.s32.totalorder %s29, 3
      %p461 = pnand %p459, %p460
      %p462 = pneg %p461
      // Predicated region
      $region65: #{tpu_custom_call.1} parent=5 // pred_check
        _
      $region66: #{tpu_custom_call.1} parent=5 // pred_check_branch
        %464 = sbr.rel (%p461) target = $region68
      $region67: #{tpu_custom_call.1} parent=5 // pred_region
        %s465 = ssub.s32 %s29, 1
        %s466 = sand.u32 %s56, 1
        %s467 = scalar_lea.sflag [#allocation3], %s466
        %s468 = sand.u32 %s56, 1
        %s469 = smul.addr %s468, 8
        %s470 = scalar_lea.vmem [#allocation2], %s469
        // Predicated region
        $region69: #{tpu_custom_call.1} parent=67 // pred_check
          %p471 = pneg %p69
        $region70: #{tpu_custom_call.1} parent=67 // pred_check_branch
          %473 = sbr.rel (%p471) target = $region72
        $region71: #{tpu_custom_call.1} parent=67 // pred_region
          %474 = dma.done %s467, 128
        $region72: #{tpu_custom_call.1} parent=67 // pred_fallthru
          _
        %s475 = sand.u32 %s34, 1
        %s476 = scalar_lea.sflag [#allocation6], %s475
        %s477 = sand.u32 %s82, 1
        %s478 = smul.addr %s477, 8
        %s479 = scalar_lea.vmem [#allocation5], %s478
        // Predicated region
        $region73: #{tpu_custom_call.1} parent=67 // pred_check
          %p480 = pneg %p95
        $region74: #{tpu_custom_call.1} parent=67 // pred_check_branch
          %482 = sbr.rel (%p480) target = $region76
        $region75: #{tpu_custom_call.1} parent=67 // pred_region
          %483 = dma.done %s476, 128
        $region76: #{tpu_custom_call.1} parent=67 // pred_fallthru
          _
        // Predicated region
        $region77: #{tpu_custom_call.1} parent=67 // pred_check
          %p484 = pneg %p116
        $region78: #{tpu_custom_call.1} parent=67 // pred_check_branch
          %486 = sbr.rel (%p484) target = $region80
        $region79: #{tpu_custom_call.1} parent=67 // pred_region
          %487 = dma.done [#allocation6], 512
        $region80: #{tpu_custom_call.1} parent=67 // pred_fallthru
          _
        // Predicated region
        $region81: #{tpu_custom_call.1} parent=67 // pred_check
          %p488 = pneg %p137
        $region82: #{tpu_custom_call.1} parent=67 // pred_check_branch
          %490 = sbr.rel (%p488) target = $region84
        $region83: #{tpu_custom_call.1} parent=67 // pred_region
          %491 = dma.done [#allocation9], 512
        $region84: #{tpu_custom_call.1} parent=67 // pred_fallthru
          _
        // Predicated region
        $region85: #{tpu_custom_call.1} parent=67 // pred_check
          %p492 = pneg %p158
        $region86: #{tpu_custom_call.1} parent=67 // pred_check_branch
          %494 = sbr.rel (%p492) target = $region88
        $region87: #{tpu_custom_call.1} parent=67 // pred_region
          %495 = dma.done [#allocation9], 512
        $region88: #{tpu_custom_call.1} parent=67 // pred_fallthru
          _
        // Predicated region
        $region89: #{tpu_custom_call.1} parent=67 // pred_check
          %p496 = pneg %p242
        $region90: #{tpu_custom_call.1} parent=67 // pred_check_branch
          %498 = sbr.rel (%p496) target = $region92
        $region91: #{tpu_custom_call.1} parent=67 // pred_region
          %499 = dma.done [#allocation12], 512
        $region92: #{tpu_custom_call.1} parent=67 // pred_fallthru
          _
        %s500 = sand.u32 %s56, 1
        %s501 = scalar_lea.sflag [#allocation3], %s500
        %s502 = sand.u32 %s56, 1
        %s503 = smul.addr %s502, 8
        %s504 = scalar_lea.vmem [#allocation2], %s503
        %p505 = pneg %p69
        %p506 = pneg %p66
        %s507 = sand.u32 %s34, 1
        %s508 = scalar_lea.sflag [#allocation6], %s507
        %s509 = sand.u32 %s82, 1
        %s510 = smul.addr %s509, 8
        %s511 = scalar_lea.vmem [#allocation5], %s510
        %p512 = pneg %p95
        %p513 = pneg %p92
        %p514 = pneg %p116
        %p515 = pneg %p113
        %p516 = pneg %p137
        %p517 = pneg %p134
        %p518 = pneg %p158
        %p519 = pneg %p155
        %p520 = pneg %p179
        %p521 = pneg %p176
        %p522 = pneg %p200
        %p523 = pneg %p197
        %p524 = pneg %p221
        %p525 = pneg %p218
        %p526 = pneg %p242
        %p527 = pneg %p239
        %p528 = pneg %p263
        %p529 = pneg %p260
        %p530 = pneg %p284
        %p531 = pneg %p281
        %p532 = pneg %p305
        %p533 = pneg %p302
        %p534 = pneg %p333
        %p535 = pneg %p330
        %s536 = sand.u32 %s320, 1
        %s537 = scalar_lea.sflag [#allocation4], %s536
        %s538 = sand.u32 %s320, 1
        %s539 = smul.addr %s538, 8
        %s540 = scalar_lea.vmem [#allocation13], %s539
        %v541 = vld [vmem:[%s470] sm:$0xff]
        %v542 = vld [vmem:[%s479] sm:$0xff]
        %v543 = vld [vmem:[#allocation7] sm:$0xff]
        %v544 = vld [vmem:[#allocation7 + $0x8] sm:$0xff]
        %v545 = vld [vmem:[#allocation7 + $0x10] sm:$0xff]
        %v546 = vld [vmem:[#allocation7 + $0x18] sm:$0xff]
        %v547 = vld [vmem:[#allocation8] sm:$0xff]
        %v548 = vld [vmem:[#allocation8 + $0x8] sm:$0xff]
        %v549 = vld [vmem:[#allocation8 + $0x10] sm:$0xff]
        %v550 = vld [vmem:[#allocation8 + $0x18] sm:$0xff]
        %v551 = vld [vmem:[#allocation10] sm:$0xff]
        %v552 = vld [vmem:[#allocation10 + $0x8] sm:$0xff]
        %v553 = vld [vmem:[#allocation10 + $0x10] sm:$0xff]
        %v554 = vld [vmem:[#allocation10 + $0x18] sm:$0xff]
        %v555 = vld [vmem:[%s5] sm:$0x1]
        %v556 = vld [vmem:[%s6] sm:$0x1]
        %v557 = vld [vmem:[%s7] sm:$0x1]
        %v558 = vld [vmem:[#allocation11] sm:$0xff]
        %v559 = vld [vmem:[#allocation11 + $0x8] sm:$0xff]
        %v560 = vld [vmem:[#allocation11 + $0x10] sm:$0xff]
        %v561 = vld [vmem:[#allocation11 + $0x18] sm:$0xff]
        %v562 = vld [vmem:[%s9] sm:$0x1]
        %v564 = vlaneseq
        %v565 = vshrl.u32 %v564, 7
        %v566 = vsub.s32 0, %v565
        %v567 = vrot.slane %v555, %v566
        %vm569 = vcmask 261120
        %v571 = vsel %vm569, %v541, 0
        %573 = vmatprep.subr.mxu0 0.0
        %574 = vmatpush1.msra.mxu0 0.0
        %575 = vmatprep.subr.mxu0 0.0
        %576 = vmatpush1.msra.mxu0 0.0
        %577 = vmatprep.subr.mxu0 0.0
        %578 = vmatpush1.msra.mxu0 0.0
        %579 = vmatprep.subr.mxu0 0.0
        %580 = vmatpush1.msra.mxu0 0.0
        %581 = vmatprep.subr.mxu0 0.0
        %582 = vmatpush1.msra.mxu0 0.0
        %583 = vmatprep.subr.mxu0 0.0
        %584 = vmatpush1.msra.mxu0 0.0
        %585 = vmatprep.subr.mxu0 0.0
        %586 = vmatpush1.msra.mxu0 0.0
        %587 = vmatprep.subr.mxu0 0.0
        %588 = vmatpush1.msra.mxu0 0.0
        %589 = vmatprep.subr.mxu0 0.0
        %590 = vmatpush1.msra.mxu0 0.0
        %591 = vmatprep.subr.mxu0 0.0
        %592 = vmatpush1.msra.mxu0 0.0
        %593 = vmatprep.subr.mxu0 0.0
        %594 = vmatpush1.msra.mxu0 0.0
        %595 = vmatprep.subr.mxu0 0.0
        %596 = vmatpush1.msra.mxu0 0.0
        %597 = vmatprep.subr.mxu0 0.0
        %598 = vmatpush1.msra.mxu0 %v546
        %599 = vmatprep.subr.mxu0 0.0
        %600 = vmatpush1.msra.mxu0 %v545
        %601 = vmatprep.subr.mxu0 0.0
        %602 = vmatpush1.msra.mxu0 %v544
        %603 = vmatprep.subr.mxu0 0.0
        %604 = vmatpush1.msra.mxu0 %v543
        %605 = vmatprep.subr.mxu0 0.0
        %606 = vmatpush2.msra.mxu0 0.0
        %607 = vmatprep.subr.mxu0 0.0
        %608 = vmatpush2.msra.mxu0 0.0
        %609 = vmatprep.subr.mxu0 0.0
        %610 = vmatpush2.msra.mxu0 0.0
        %611 = vmatprep.subr.mxu0 0.0
        %612 = vmatpush2.msra.mxu0 0.0
        %613 = vmatprep.subr.mxu0 0.0
        %614 = vmatpush2.msra.mxu0 0.0
        %615 = vmatprep.subr.mxu0 0.0
        %616 = vmatpush2.msra.mxu0 0.0
        %617 = vmatprep.subr.mxu0 0.0
        %618 = vmatpush2.msra.mxu0 0.0
        %619 = vmatprep.subr.mxu0 0.0
        %620 = vmatpush2.msra.mxu0 0.0
        %621 = vmatprep.subr.mxu0 0.0
        %622 = vmatpush2.msra.mxu0 0.0
        %623 = vmatprep.subr.mxu0 0.0
        %624 = vmatpush2.msra.mxu0 0.0
        %625 = vmatprep.subr.mxu0 0.0
        %626 = vmatpush2.msra.mxu0 0.0
        %627 = vmatprep.subr.mxu0 0.0
        %628 = vmatpush2.msra.mxu0 0.0
        %629 = vmatprep.subr.mxu0 0.0
        %630 = vmatpush2.msra.mxu0 0.0
        %631 = vmatprep.subr.mxu0 0.0
        %632 = vmatpush2.msra.mxu0 0.0
        %633 = vmatprep.subr.mxu0 0.0
        %634 = vmatpush2.msra.mxu0 0.0
        %635 = vmatprep.subr.mxu0 0.0
        %636 = vmatpush2.msra.mxu0 0.0
        %637 = vmatprep.mubr.f32.mxu0 0.0
        %638 = vmatmul.mubr.f32.gmra.mxu0 %v571
        %v639 = vpop.f32.mrf.mxu0
        %v640 = vadd.f32 %v567, %v639
        %v641 = vpop.f32.mrf.mxu0
        %642 = vdwg.mxu0
        %v644 = vlaneseq
        %v645 = vshrl.u32 %v644, 7
        %v646 = vsub.s32 0, %v645
        %v647 = vrot.slane %v556, %v646
        %v650 = vsel %vm569, %v542, 0
        %652 = vmatprep.subr.mxu0 0.0
        %653 = vmatpush1.msra.mxu0 0.0
        %654 = vmatprep.subr.mxu0 0.0
        %655 = vmatpush1.msra.mxu0 0.0
        %656 = vmatprep.subr.mxu0 0.0
        %657 = vmatpush1.msra.mxu0 0.0
        %658 = vmatprep.subr.mxu0 0.0
        %659 = vmatpush1.msra.mxu0 0.0
        %660 = vmatprep.subr.mxu0 0.0
        %661 = vmatpush1.msra.mxu0 0.0
        %662 = vmatprep.subr.mxu0 0.0
        %663 = vmatpush1.msra.mxu0 0.0
        %664 = vmatprep.subr.mxu0 0.0
        %665 = vmatpush1.msra.mxu0 0.0
        %666 = vmatprep.subr.mxu0 0.0
        %667 = vmatpush1.msra.mxu0 0.0
        %668 = vmatprep.subr.mxu0 0.0
        %669 = vmatpush1.msra.mxu0 0.0
        %670 = vmatprep.subr.mxu0 0.0
        %671 = vmatpush1.msra.mxu0 0.0
        %672 = vmatprep.subr.mxu0 0.0
        %673 = vmatpush1.msra.mxu0 0.0
        %674 = vmatprep.subr.mxu0 0.0
        %675 = vmatpush1.msra.mxu0 0.0
        %676 = vmatprep.subr.mxu0 0.0
        %677 = vmatpush1.msra.mxu0 %v550
        %678 = vmatprep.subr.mxu0 0.0
        %679 = vmatpush1.msra.mxu0 %v549
        %680 = vmatprep.subr.mxu0 0.0
        %681 = vmatpush1.msra.mxu0 %v548
        %682 = vmatprep.subr.mxu0 0.0
        %683 = vmatpush1.msra.mxu0 %v547
        %684 = vmatprep.subr.mxu0 0.0
        %685 = vmatpush2.msra.mxu0 0.0
        %686 = vmatprep.subr.mxu0 0.0
        %687 = vmatpush2.msra.mxu0 0.0
        %688 = vmatprep.subr.mxu0 0.0
        %689 = vmatpush2.msra.mxu0 0.0
        %690 = vmatprep.subr.mxu0 0.0
        %691 = vmatpush2.msra.mxu0 0.0
        %692 = vmatprep.subr.mxu0 0.0
        %693 = vmatpush2.msra.mxu0 0.0
        %694 = vmatprep.subr.mxu0 0.0
        %695 = vmatpush2.msra.mxu0 0.0
        %696 = vmatprep.subr.mxu0 0.0
        %697 = vmatpush2.msra.mxu0 0.0
        %698 = vmatprep.subr.mxu0 0.0
        %699 = vmatpush2.msra.mxu0 0.0
        %700 = vmatprep.subr.mxu0 0.0
        %701 = vmatpush2.msra.mxu0 0.0
        %702 = vmatprep.subr.mxu0 0.0
        %703 = vmatpush2.msra.mxu0 0.0
        %704 = vmatprep.subr.mxu0 0.0
        %705 = vmatpush2.msra.mxu0 0.0
        %706 = vmatprep.subr.mxu0 0.0
        %707 = vmatpush2.msra.mxu0 0.0
        %708 = vmatprep.subr.mxu0 0.0
        %709 = vmatpush2.msra.mxu0 0.0
        %710 = vmatprep.subr.mxu0 0.0
        %711 = vmatpush2.msra.mxu0 0.0
        %712 = vmatprep.subr.mxu0 0.0
        %713 = vmatpush2.msra.mxu0 0.0
        %714 = vmatprep.subr.mxu0 0.0
        %715 = vmatpush2.msra.mxu0 0.0
        %716 = vmatprep.mubr.f32.mxu0 0.0
        %717 = vmatmul.mubr.f32.gmra.mxu0 %v650
        %v718 = vpop.f32.mrf.mxu0
        %v719 = vadd.f32 %v647, %v718
        %v720 = vpop.f32.mrf.mxu0
        %721 = vdwg.mxu0
        %v723 = vlaneseq
        %v724 = vshrl.u32 %v723, 7
        %v725 = vsub.s32 0, %v724
        %v726 = vrot.slane %v557, %v725
        %728 = vmatprep.subr.mxu0 0.0
        %729 = vmatpush1.msra.mxu0 0.0
        %730 = vmatprep.subr.mxu0 0.0
        %731 = vmatpush1.msra.mxu0 0.0
        %732 = vmatprep.subr.mxu0 0.0
        %733 = vmatpush1.msra.mxu0 0.0
        %734 = vmatprep.subr.mxu0 0.0
        %735 = vmatpush1.msra.mxu0 0.0
        %736 = vmatprep.subr.mxu0 0.0
        %737 = vmatpush1.msra.mxu0 0.0
        %738 = vmatprep.subr.mxu0 0.0
        %739 = vmatpush1.msra.mxu0 0.0
        %740 = vmatprep.subr.mxu0 0.0
        %741 = vmatpush1.msra.mxu0 0.0
        %742 = vmatprep.subr.mxu0 0.0
        %743 = vmatpush1.msra.mxu0 0.0
        %744 = vmatprep.subr.mxu0 0.0
        %745 = vmatpush1.msra.mxu0 0.0
        %746 = vmatprep.subr.mxu0 0.0
        %747 = vmatpush1.msra.mxu0 0.0
        %748 = vmatprep.subr.mxu0 0.0
        %749 = vmatpush1.msra.mxu0 0.0
        %750 = vmatprep.subr.mxu0 0.0
        %751 = vmatpush1.msra.mxu0 0.0
        %752 = vmatprep.subr.mxu0 0.0
        %753 = vmatpush1.msra.mxu0 %v554
        %754 = vmatprep.subr.mxu0 0.0
        %755 = vmatpush1.msra.mxu0 %v553
        %756 = vmatprep.subr.mxu0 0.0
        %757 = vmatpush1.msra.mxu0 %v552
        %758 = vmatprep.subr.mxu0 0.0
        %759 = vmatpush1.msra.mxu0 %v551
        %760 = vmatprep.subr.mxu0 0.0
        %761 = vmatpush2.msra.mxu0 0.0
        %762 = vmatprep.subr.mxu0 0.0
        %763 = vmatpush2.msra.mxu0 0.0
        %764 = vmatprep.subr.mxu0 0.0
        %765 = vmatpush2.msra.mxu0 0.0
        %766 = vmatprep.subr.mxu0 0.0
        %767 = vmatpush2.msra.mxu0 0.0
        %768 = vmatprep.subr.mxu0 0.0
        %769 = vmatpush2.msra.mxu0 0.0
        %770 = vmatprep.subr.mxu0 0.0
        %771 = vmatpush2.msra.mxu0 0.0
        %772 = vmatprep.subr.mxu0 0.0
        %773 = vmatpush2.msra.mxu0 0.0
        %774 = vmatprep.subr.mxu0 0.0
        %775 = vmatpush2.msra.mxu0 0.0
        %776 = vmatprep.subr.mxu0 0.0
        %777 = vmatpush2.msra.mxu0 0.0
        %778 = vmatprep.subr.mxu0 0.0
        %779 = vmatpush2.msra.mxu0 0.0
        %780 = vmatprep.subr.mxu0 0.0
        %781 = vmatpush2.msra.mxu0 0.0
        %782 = vmatprep.subr.mxu0 0.0
        %783 = vmatpush2.msra.mxu0 0.0
        %784 = vmatprep.subr.mxu0 0.0
        %785 = vmatpush2.msra.mxu0 0.0
        %786 = vmatprep.subr.mxu0 0.0
        %787 = vmatpush2.msra.mxu0 0.0
        %788 = vmatprep.subr.mxu0 0.0
        %789 = vmatpush2.msra.mxu0 0.0
        %790 = vmatprep.subr.mxu0 0.0
        %791 = vmatpush2.msra.mxu0 0.0
        %792 = vmatprep.mubr.f32.mxu0 0.0
        %793 = vmatmul.mubr.f32.gmra.mxu0 %v650
        %v794 = vpop.f32.mrf.mxu0
        %v795 = vadd.f32 %v726, %v794
        %v796 = vpop.f32.mrf.mxu0
        %797 = vdwg.mxu0
        %799 = vrot.lane.b32.xlu0 %v640, 120
        %v800 = vpop.permute.xlu0 %799
        %802 = vrot.lane.b32.xlu0 %v640, 112
        %v803 = vpop.permute.xlu0 %802
        %805 = vrot.lane.b32.xlu0 %v640, 104
        %v806 = vpop.permute.xlu0 %805
        %v808 = vcombine.low %v640, %v803
        %v809 = vcombine.high %v640, %v803
        %v811 = vunpack.c.l.s4 1983009808
        %v812 = vunpack.c.0.s8 %v811
        %v813 = vlaneseq
        %v814 = vshrl.u32 %v813, 7
        %v815 = vsub.s32 %v812, %v814
        %v816 = vrot.slane %v808, %v815
        %v818 = vunpack.c.l.s4 1983009808
        %v819 = vunpack.c.0.s8 %v818
        %v820 = vlaneseq
        %v821 = vshrl.u32 %v820, 7
        %v822 = vsub.s32 %v819, %v821
        %v823 = vrot.slane %v809, %v822
        %v824 = vcombine.low %v800, %v806
        %v825 = vcombine.high %v800, %v806
        %v827 = vunpack.c.l.s4 1983009808
        %v828 = vunpack.c.0.s8 %v827
        %v829 = vlaneseq
        %v830 = vshrl.u32 %v829, 7
        %v831 = vsub.s32 %v828, %v830
        %v832 = vrot.slane %v824, %v831
        %v834 = vunpack.c.l.s4 1983009808
        %v835 = vunpack.c.0.s8 %v834
        %v836 = vlaneseq
        %v837 = vshrl.u32 %v836, 7
        %v838 = vsub.s32 %v835, %v837
        %v839 = vrot.slane %v825, %v838
        %v840 = vcombine.low %v816, %v832
        %v841 = vcombine.high %v816, %v832
        %v843 = vunpack.c.l.s4 1934713408
        %v844 = vunpack.c.0.s8 %v843
        %v845 = vlaneseq
        %v846 = vshrl.u32 %v845, 7
        %v847 = vsub.s32 %v844, %v846
        %v848 = vrot.slane %v840, %v847
        %v850 = vunpack.c.l.s4 1934713408
        %v851 = vunpack.c.0.s8 %v850
        %v852 = vlaneseq
        %v853 = vshrl.u32 %v852, 7
        %v854 = vsub.s32 %v851, %v853
        %v855 = vrot.slane %v841, %v854
        %v856 = vcombine.low %v823, %v839
        %v857 = vcombine.high %v823, %v839
        %v859 = vunpack.c.l.s4 1934713408
        %v860 = vunpack.c.0.s8 %v859
        %v861 = vlaneseq
        %v862 = vshrl.u32 %v861, 7
        %v863 = vsub.s32 %v860, %v862
        %v864 = vrot.slane %v856, %v863
        %v866 = vunpack.c.l.s4 1934713408
        %v867 = vunpack.c.0.s8 %v866
        %v868 = vlaneseq
        %v869 = vshrl.u32 %v868, 7
        %v870 = vsub.s32 %v867, %v869
        %v871 = vrot.slane %v857, %v870
        %v872 = vcombine.high %v848, 0.0
        %v873 = vcombine.high %v855, 0.0
        %v874 = vcombine.high %v864, 0.0
        %v875 = vcombine.high %v871, 0.0
        %v876 = vcombine.low %v848, %v855
        %v878 = vunpack.c.l.s4 1983009808
        %v879 = vunpack.c.0.s8 %v878
        %v880 = vlaneseq
        %v881 = vshrl.u32 %v880, 7
        %v882 = vsub.s32 %v879, %v881
        %v883 = vrot.slane %v876, %v882
        %v884 = vcombine.low %v872, %v873
        %v886 = vunpack.c.l.s4 1983009808
        %v887 = vunpack.c.0.s8 %v886
        %v888 = vlaneseq
        %v889 = vshrl.u32 %v888, 7
        %v890 = vsub.s32 %v887, %v889
        %v891 = vrot.slane %v884, %v890
        %v892 = vcombine.low %v864, %v871
        %v894 = vunpack.c.l.s4 1983009808
        %v895 = vunpack.c.0.s8 %v894
        %v896 = vlaneseq
        %v897 = vshrl.u32 %v896, 7
        %v898 = vsub.s32 %v895, %v897
        %v899 = vrot.slane %v892, %v898
        %v900 = vcombine.low %v874, %v875
        %v902 = vunpack.c.l.s4 1983009808
        %v903 = vunpack.c.0.s8 %v902
        %v904 = vlaneseq
        %v905 = vshrl.u32 %v904, 7
        %v906 = vsub.s32 %v903, %v905
        %v907 = vrot.slane %v900, %v906
        %v908 = vcombine.low %v883, %v891
        %v909 = vcombine.high %v883, %v891
        %v911 = vunpack.c.l.s4 1934713408
        %v912 = vunpack.c.0.s8 %v911
        %v913 = vlaneseq
        %v914 = vshrl.u32 %v913, 7
        %v915 = vsub.s32 %v912, %v914
        %v916 = vrot.slane %v908, %v915
        %v918 = vunpack.c.l.s4 1934713408
        %v919 = vunpack.c.0.s8 %v918
        %v920 = vlaneseq
        %v921 = vshrl.u32 %v920, 7
        %v922 = vsub.s32 %v919, %v921
        %v923 = vrot.slane %v909, %v922
        %v924 = vcombine.low %v899, %v907
        %v925 = vcombine.high %v899, %v907
        %v927 = vunpack.c.l.s4 1934713408
        %v928 = vunpack.c.0.s8 %v927
        %v929 = vlaneseq
        %v930 = vshrl.u32 %v929, 7
        %v931 = vsub.s32 %v928, %v930
        %v932 = vrot.slane %v924, %v931
        %v934 = vunpack.c.l.s4 1934713408
        %v935 = vunpack.c.0.s8 %v934
        %v936 = vlaneseq
        %v937 = vshrl.u32 %v936, 7
        %v938 = vsub.s32 %v935, %v937
        %v939 = vrot.slane %v925, %v938
        %v940 = vcombine.low %v916, %v932
        %v941 = vcombine.high %v916, %v932
        %v942 = vcombine.low %v923, %v939
        %v943 = vcombine.high %v923, %v939
        %945 = vrot.lane.b32.xlu0 %v719, 120
        %v946 = vpop.permute.xlu0 %945
        %948 = vrot.lane.b32.xlu0 %v719, 112
        %v949 = vpop.permute.xlu0 %948
        %951 = vrot.lane.b32.xlu0 %v719, 104
        %v952 = vpop.permute.xlu0 %951
        %v954 = vcombine.low %v719, %v949
        %v955 = vcombine.high %v719, %v949
        %v957 = vunpack.c.l.s4 1983009808
        %v958 = vunpack.c.0.s8 %v957
        %v959 = vlaneseq
        %v960 = vshrl.u32 %v959, 7
        %v961 = vsub.s32 %v958, %v960
        %v962 = vrot.slane %v954, %v961
        %v964 = vunpack.c.l.s4 1983009808
        %v965 = vunpack.c.0.s8 %v964
        %v966 = vlaneseq
        %v967 = vshrl.u32 %v966, 7
        %v968 = vsub.s32 %v965, %v967
        %v969 = vrot.slane %v955, %v968
        %v970 = vcombine.low %v946, %v952
        %v971 = vcombine.high %v946, %v952
        %v973 = vunpack.c.l.s4 1983009808
        %v974 = vunpack.c.0.s8 %v973
        %v975 = vlaneseq
        %v976 = vshrl.u32 %v975, 7
        %v977 = vsub.s32 %v974, %v976
        %v978 = vrot.slane %v970, %v977
        %v980 = vunpack.c.l.s4 1983009808
        %v981 = vunpack.c.0.s8 %v980
        %v982 = vlaneseq
        %v983 = vshrl.u32 %v982, 7
        %v984 = vsub.s32 %v981, %v983
        %v985 = vrot.slane %v971, %v984
        %v986 = vcombine.low %v962, %v978
        %v987 = vcombine.high %v962, %v978
        %v989 = vunpack.c.l.s4 1934713408
        %v990 = vunpack.c.0.s8 %v989
        %v991 = vlaneseq
        %v992 = vshrl.u32 %v991, 7
        %v993 = vsub.s32 %v990, %v992
        %v994 = vrot.slane %v986, %v993
        %v996 = vunpack.c.l.s4 1934713408
        %v997 = vunpack.c.0.s8 %v996
        %v998 = vlaneseq
        %v999 = vshrl.u32 %v998, 7
        %v1000 = vsub.s32 %v997, %v999
        %v1001 = vrot.slane %v987, %v1000
        %v1002 = vcombine.low %v969, %v985
        %v1003 = vcombine.high %v969, %v985
        %v1005 = vunpack.c.l.s4 1934713408
        %v1006 = vunpack.c.0.s8 %v1005
        %v1007 = vlaneseq
        %v1008 = vshrl.u32 %v1007, 7
        %v1009 = vsub.s32 %v1006, %v1008
        %v1010 = vrot.slane %v1002, %v1009
        %v1012 = vunpack.c.l.s4 1934713408
        %v1013 = vunpack.c.0.s8 %v1012
        %v1014 = vlaneseq
        %v1015 = vshrl.u32 %v1014, 7
        %v1016 = vsub.s32 %v1013, %v1015
        %v1017 = vrot.slane %v1003, %v1016
        %v1018 = vcombine.high %v994, 0.0
        %v1019 = vcombine.high %v1001, 0.0
        %v1020 = vcombine.high %v1010, 0.0
        %v1021 = vcombine.high %v1017, 0.0
        %v1022 = vcombine.low %v994, %v1001
        %v1024 = vunpack.c.l.s4 1983009808
        %v1025 = vunpack.c.0.s8 %v1024
        %v1026 = vlaneseq
        %v1027 = vshrl.u32 %v1026, 7
        %v1028 = vsub.s32 %v1025, %v1027
        %v1029 = vrot.slane %v1022, %v1028
        %v1030 = vcombine.low %v1018, %v1019
        %v1032 = vunpack.c.l.s4 1983009808
        %v1033 = vunpack.c.0.s8 %v1032
        %v1034 = vlaneseq
        %v1035 = vshrl.u32 %v1034, 7
        %v1036 = vsub.s32 %v1033, %v1035
        %v1037 = vrot.slane %v1030, %v1036
        %v1038 = vcombine.low %v1010, %v1017
        %v1040 = vunpack.c.l.s4 1983009808
        %v1041 = vunpack.c.0.s8 %v1040
        %v1042 = vlaneseq
        %v1043 = vshrl.u32 %v1042, 7
        %v1044 = vsub.s32 %v1041, %v1043
        %v1045 = vrot.slane %v1038, %v1044
        %v1046 = vcombine.low %v1020, %v1021
        %v1048 = vunpack.c.l.s4 1983009808
        %v1049 = vunpack.c.0.s8 %v1048
        %v1050 = vlaneseq
        %v1051 = vshrl.u32 %v1050, 7
        %v1052 = vsub.s32 %v1049, %v1051
        %v1053 = vrot.slane %v1046, %v1052
        %v1054 = vcombine.low %v1029, %v1037
        %v1055 = vcombine.high %v1029, %v1037
        %v1057 = vunpack.c.l.s4 1934713408
        %v1058 = vunpack.c.0.s8 %v1057
        %v1059 = vlaneseq
        %v1060 = vshrl.u32 %v1059, 7
        %v1061 = vsub.s32 %v1058, %v1060
        %v1062 = vrot.slane %v1054, %v1061
        %v1064 = vunpack.c.l.s4 1934713408
        %v1065 = vunpack.c.0.s8 %v1064
        %v1066 = vlaneseq
        %v1067 = vshrl.u32 %v1066, 7
        %v1068 = vsub.s32 %v1065, %v1067
        %v1069 = vrot.slane %v1055, %v1068
        %v1070 = vcombine.low %v1045, %v1053
        %v1071 = vcombine.high %v1045, %v1053
        %v1073 = vunpack.c.l.s4 1934713408
        %v1074 = vunpack.c.0.s8 %v1073
        %v1075 = vlaneseq
        %v1076 = vshrl.u32 %v1075, 7
        %v1077 = vsub.s32 %v1074, %v1076
        %v1078 = vrot.slane %v1070, %v1077
        %v1080 = vunpack.c.l.s4 1934713408
        %v1081 = vunpack.c.0.s8 %v1080
        %v1082 = vlaneseq
        %v1083 = vshrl.u32 %v1082, 7
        %v1084 = vsub.s32 %v1081, %v1083
        %v1085 = vrot.slane %v1071, %v1084
        %v1086 = vcombine.low %v1062, %v1078
        %v1087 = vcombine.high %v1062, %v1078
        %v1088 = vcombine.low %v1069, %v1085
        %v1089 = vcombine.high %v1069, %v1085
        %1091 = vrot.lane.b32.xlu0 %v795, 120
        %v1092 = vpop.permute.xlu0 %1091
        %1094 = vrot.lane.b32.xlu0 %v795, 112
        %v1095 = vpop.permute.xlu0 %1094
        %1097 = vrot.lane.b32.xlu0 %v795, 104
        %v1098 = vpop.permute.xlu0 %1097
        %v1100 = vcombine.low %v795, %v1095
        %v1101 = vcombine.high %v795, %v1095
        %v1103 = vunpack.c.l.s4 1983009808
        %v1104 = vunpack.c.0.s8 %v1103
        %v1105 = vlaneseq
        %v1106 = vshrl.u32 %v1105, 7
        %v1107 = vsub.s32 %v1104, %v1106
        %v1108 = vrot.slane %v1100, %v1107
        %v1110 = vunpack.c.l.s4 1983009808
        %v1111 = vunpack.c.0.s8 %v1110
        %v1112 = vlaneseq
        %v1113 = vshrl.u32 %v1112, 7
        %v1114 = vsub.s32 %v1111, %v1113
        %v1115 = vrot.slane %v1101, %v1114
        %v1116 = vcombine.low %v1092, %v1098
        %v1117 = vcombine.high %v1092, %v1098
        %v1119 = vunpack.c.l.s4 1983009808
        %v1120 = vunpack.c.0.s8 %v1119
        %v1121 = vlaneseq
        %v1122 = vshrl.u32 %v1121, 7
        %v1123 = vsub.s32 %v1120, %v1122
        %v1124 = vrot.slane %v1116, %v1123
        %v1126 = vunpack.c.l.s4 1983009808
        %v1127 = vunpack.c.0.s8 %v1126
        %v1128 = vlaneseq
        %v1129 = vshrl.u32 %v1128, 7
        %v1130 = vsub.s32 %v1127, %v1129
        %v1131 = vrot.slane %v1117, %v1130
        %v1132 = vcombine.low %v1108, %v1124
        %v1133 = vcombine.high %v1108, %v1124
        %v1135 = vunpack.c.l.s4 1934713408
        %v1136 = vunpack.c.0.s8 %v1135
        %v1137 = vlaneseq
        %v1138 = vshrl.u32 %v1137, 7
        %v1139 = vsub.s32 %v1136, %v1138
        %v1140 = vrot.slane %v1132, %v1139
        %v1142 = vunpack.c.l.s4 1934713408
        %v1143 = vunpack.c.0.s8 %v1142
        %v1144 = vlaneseq
        %v1145 = vshrl.u32 %v1144, 7
        %v1146 = vsub.s32 %v1143, %v1145
        %v1147 = vrot.slane %v1133, %v1146
        %v1148 = vcombine.low %v1115, %v1131
        %v1149 = vcombine.high %v1115, %v1131
        %v1151 = vunpack.c.l.s4 1934713408
        %v1152 = vunpack.c.0.s8 %v1151
        %v1153 = vlaneseq
        %v1154 = vshrl.u32 %v1153, 7
        %v1155 = vsub.s32 %v1152, %v1154
        %v1156 = vrot.slane %v1148, %v1155
        %v1158 = vunpack.c.l.s4 1934713408
        %v1159 = vunpack.c.0.s8 %v1158
        %v1160 = vlaneseq
        %v1161 = vshrl.u32 %v1160, 7
        %v1162 = vsub.s32 %v1159, %v1161
        %v1163 = vrot.slane %v1149, %v1162
        %v1164 = vcombine.high %v1140, 0.0
        %v1165 = vcombine.high %v1147, 0.0
        %v1166 = vcombine.high %v1156, 0.0
        %v1167 = vcombine.high %v1163, 0.0
        %v1168 = vcombine.low %v1140, %v1147
        %v1170 = vunpack.c.l.s4 1983009808
        %v1171 = vunpack.c.0.s8 %v1170
        %v1172 = vlaneseq
        %v1173 = vshrl.u32 %v1172, 7
        %v1174 = vsub.s32 %v1171, %v1173
        %v1175 = vrot.slane %v1168, %v1174
        %v1176 = vcombine.low %v1164, %v1165
        %v1178 = vunpack.c.l.s4 1983009808
        %v1179 = vunpack.c.0.s8 %v1178
        %v1180 = vlaneseq
        %v1181 = vshrl.u32 %v1180, 7
        %v1182 = vsub.s32 %v1179, %v1181
        %v1183 = vrot.slane %v1176, %v1182
        %v1184 = vcombine.low %v1156, %v1163
        %v1186 = vunpack.c.l.s4 1983009808
        %v1187 = vunpack.c.0.s8 %v1186
        %v1188 = vlaneseq
        %v1189 = vshrl.u32 %v1188, 7
        %v1190 = vsub.s32 %v1187, %v1189
        %v1191 = vrot.slane %v1184, %v1190
        %v1192 = vcombine.low %v1166, %v1167
        %v1194 = vunpack.c.l.s4 1983009808
        %v1195 = vunpack.c.0.s8 %v1194
        %v1196 = vlaneseq
        %v1197 = vshrl.u32 %v1196, 7
        %v1198 = vsub.s32 %v1195, %v1197
        %v1199 = vrot.slane %v1192, %v1198
        %v1200 = vcombine.low %v1175, %v1183
        %v1201 = vcombine.high %v1175, %v1183
        %v1203 = vunpack.c.l.s4 1934713408
        %v1204 = vunpack.c.0.s8 %v1203
        %v1205 = vlaneseq
        %v1206 = vshrl.u32 %v1205, 7
        %v1207 = vsub.s32 %v1204, %v1206
        %v1208 = vrot.slane %v1200, %v1207
        %v1210 = vunpack.c.l.s4 1934713408
        %v1211 = vunpack.c.0.s8 %v1210
        %v1212 = vlaneseq
        %v1213 = vshrl.u32 %v1212, 7
        %v1214 = vsub.s32 %v1211, %v1213
        %v1215 = vrot.slane %v1201, %v1214
        %v1216 = vcombine.low %v1191, %v1199
        %v1217 = vcombine.high %v1191, %v1199
        %v1219 = vunpack.c.l.s4 1934713408
        %v1220 = vunpack.c.0.s8 %v1219
        %v1221 = vlaneseq
        %v1222 = vshrl.u32 %v1221, 7
        %v1223 = vsub.s32 %v1220, %v1222
        %v1224 = vrot.slane %v1216, %v1223
        %v1226 = vunpack.c.l.s4 1934713408
        %v1227 = vunpack.c.0.s8 %v1226
        %v1228 = vlaneseq
        %v1229 = vshrl.u32 %v1228, 7
        %v1230 = vsub.s32 %v1227, %v1229
        %v1231 = vrot.slane %v1217, %v1230
        %v1232 = vcombine.low %v1208, %v1224
        %v1233 = vcombine.high %v1208, %v1224
        %v1234 = vcombine.low %v1215, %v1231
        %v1235 = vcombine.high %v1215, %v1231
        %vm1236 = vcmask 64512
        %v1238 = vsel %vm1236, %v940, 0
        %v1241 = vsel %vm1236, %v1086, 0
        %1243 = vmatprep.subr.mxu0 0.0
        %1244 = vmatpush1.xpose.msra.mxu0 0.0
        %1245 = vmatprep.subr.mxu0 0.0
        %1246 = vmatpush1.xpose.msra.mxu0 0.0
        %1247 = vmatprep.subr.mxu0 0.0
        %1248 = vmatpush1.xpose.msra.mxu0 0.0
        %1249 = vmatprep.subr.mxu0 0.0
        %1250 = vmatpush1.xpose.msra.mxu0 0.0
        %1251 = vmatprep.subr.mxu0 0.0
        %1252 = vmatpush1.xpose.msra.mxu0 0.0
        %1253 = vmatprep.subr.mxu0 0.0
        %1254 = vmatpush1.xpose.msra.mxu0 0.0
        %1255 = vmatprep.subr.mxu0 0.0
        %1256 = vmatpush1.xpose.msra.mxu0 0.0
        %1257 = vmatprep.subr.mxu0 0.0
        %1258 = vmatpush1.xpose.msra.mxu0 0.0
        %1259 = vmatprep.subr.mxu0 0.0
        %1260 = vmatpush1.xpose.msra.mxu0 0.0
        %1261 = vmatprep.subr.mxu0 0.0
        %1262 = vmatpush1.xpose.msra.mxu0 0.0
        %1263 = vmatprep.subr.mxu0 0.0
        %1264 = vmatpush1.xpose.msra.mxu0 0.0
        %1265 = vmatprep.subr.mxu0 0.0
        %1266 = vmatpush1.xpose.msra.mxu0 0.0
        %1267 = vmatprep.subr.mxu0 0.0
        %1268 = vmatpush1.xpose.msra.mxu0 0.0
        %1269 = vmatprep.subr.mxu0 0.0
        %1270 = vmatpush1.xpose.msra.mxu0 0.0
        %1271 = vmatprep.subr.mxu0 0.0
        %1272 = vmatpush1.xpose.msra.mxu0 0.0
        %1273 = vmatprep.subr.mxu0 0.0
        %1274 = vmatpush1.xpose.msra.mxu0 %v1241
        %1275 = vmatprep.subr.mxu0 0.0
        %1276 = vmatpush2.xpose.msra.mxu0 0.0
        %1277 = vmatprep.subr.mxu0 0.0
        %1278 = vmatpush2.xpose.msra.mxu0 0.0
        %1279 = vmatprep.subr.mxu0 0.0
        %1280 = vmatpush2.xpose.msra.mxu0 0.0
        %1281 = vmatprep.subr.mxu0 0.0
        %1282 = vmatpush2.xpose.msra.mxu0 0.0
        %1283 = vmatprep.subr.mxu0 0.0
        %1284 = vmatpush2.xpose.msra.mxu0 0.0
        %1285 = vmatprep.subr.mxu0 0.0
        %1286 = vmatpush2.xpose.msra.mxu0 0.0
        %1287 = vmatprep.subr.mxu0 0.0
        %1288 = vmatpush2.xpose.msra.mxu0 0.0
        %1289 = vmatprep.subr.mxu0 0.0
        %1290 = vmatpush2.xpose.msra.mxu0 0.0
        %1291 = vmatprep.subr.mxu0 0.0
        %1292 = vmatpush2.xpose.msra.mxu0 0.0
        %1293 = vmatprep.subr.mxu0 0.0
        %1294 = vmatpush2.xpose.msra.mxu0 0.0
        %1295 = vmatprep.subr.mxu0 0.0
        %1296 = vmatpush2.xpose.msra.mxu0 0.0
        %1297 = vmatprep.subr.mxu0 0.0
        %1298 = vmatpush2.xpose.msra.mxu0 0.0
        %1299 = vmatprep.subr.mxu0 0.0
        %1300 = vmatpush2.xpose.msra.mxu0 0.0
        %1301 = vmatprep.subr.mxu0 0.0
        %1302 = vmatpush2.xpose.msra.mxu0 0.0
        %1303 = vmatprep.subr.mxu0 0.0
        %1304 = vmatpush2.xpose.msra.mxu0 0.0
        %1305 = vmatprep.subr.mxu0 0.0
        %1306 = vmatpush2.xpose.msra.mxu0 0.0
        %1307 = vmatprep.mubr.f32.mxu0 0.0
        %1308 = vmatmul.mubr.f32.gmra.mxu0 %v1238
        %v1309 = vpop.f32.mrf.mxu0
        %v1310 = vadd.f32 0.0, %v1309
        %v1311 = vpop.f32.mrf.mxu0
        %1312 = vdwg.mxu0
        %v1314 = vsel %vm1236, %v941, 0
        %v1317 = vsel %vm1236, %v1087, 0
        %1319 = vmatprep.subr.mxu0 0.0
        %1320 = vmatpush1.xpose.msra.mxu0 0.0
        %1321 = vmatprep.subr.mxu0 0.0
        %1322 = vmatpush1.xpose.msra.mxu0 0.0
        %1323 = vmatprep.subr.mxu0 0.0
        %1324 = vmatpush1.xpose.msra.mxu0 0.0
        %1325 = vmatprep.subr.mxu0 0.0
        %1326 = vmatpush1.xpose.msra.mxu0 0.0
        %1327 = vmatprep.subr.mxu0 0.0
        %1328 = vmatpush1.xpose.msra.mxu0 0.0
        %1329 = vmatprep.subr.mxu0 0.0
        %1330 = vmatpush1.xpose.msra.mxu0 0.0
        %1331 = vmatprep.subr.mxu0 0.0
        %1332 = vmatpush1.xpose.msra.mxu0 0.0
        %1333 = vmatprep.subr.mxu0 0.0
        %1334 = vmatpush1.xpose.msra.mxu0 0.0
        %1335 = vmatprep.subr.mxu0 0.0
        %1336 = vmatpush1.xpose.msra.mxu0 0.0
        %1337 = vmatprep.subr.mxu0 0.0
        %1338 = vmatpush1.xpose.msra.mxu0 0.0
        %1339 = vmatprep.subr.mxu0 0.0
        %1340 = vmatpush1.xpose.msra.mxu0 0.0
        %1341 = vmatprep.subr.mxu0 0.0
        %1342 = vmatpush1.xpose.msra.mxu0 0.0
        %1343 = vmatprep.subr.mxu0 0.0
        %1344 = vmatpush1.xpose.msra.mxu0 0.0
        %1345 = vmatprep.subr.mxu0 0.0
        %1346 = vmatpush1.xpose.msra.mxu0 0.0
        %1347 = vmatprep.subr.mxu0 0.0
        %1348 = vmatpush1.xpose.msra.mxu0 0.0
        %1349 = vmatprep.subr.mxu0 0.0
        %1350 = vmatpush1.xpose.msra.mxu0 %v1317
        %1351 = vmatprep.subr.mxu0 0.0
        %1352 = vmatpush2.xpose.msra.mxu0 0.0
        %1353 = vmatprep.subr.mxu0 0.0
        %1354 = vmatpush2.xpose.msra.mxu0 0.0
        %1355 = vmatprep.subr.mxu0 0.0
        %1356 = vmatpush2.xpose.msra.mxu0 0.0
        %1357 = vmatprep.subr.mxu0 0.0
        %1358 = vmatpush2.xpose.msra.mxu0 0.0
        %1359 = vmatprep.subr.mxu0 0.0
        %1360 = vmatpush2.xpose.msra.mxu0 0.0
        %1361 = vmatprep.subr.mxu0 0.0
        %1362 = vmatpush2.xpose.msra.mxu0 0.0
        %1363 = vmatprep.subr.mxu0 0.0
        %1364 = vmatpush2.xpose.msra.mxu0 0.0
        %1365 = vmatprep.subr.mxu0 0.0
        %1366 = vmatpush2.xpose.msra.mxu0 0.0
        %1367 = vmatprep.subr.mxu0 0.0
        %1368 = vmatpush2.xpose.msra.mxu0 0.0
        %1369 = vmatprep.subr.mxu0 0.0
        %1370 = vmatpush2.xpose.msra.mxu0 0.0
        %1371 = vmatprep.subr.mxu0 0.0
        %1372 = vmatpush2.xpose.msra.mxu0 0.0
        %1373 = vmatprep.subr.mxu0 0.0
        %1374 = vmatpush2.xpose.msra.mxu0 0.0
        %1375 = vmatprep.subr.mxu0 0.0
        %1376 = vmatpush2.xpose.msra.mxu0 0.0
        %1377 = vmatprep.subr.mxu0 0.0
        %1378 = vmatpush2.xpose.msra.mxu0 0.0
        %1379 = vmatprep.subr.mxu0 0.0
        %1380 = vmatpush2.xpose.msra.mxu0 0.0
        %1381 = vmatprep.subr.mxu0 0.0
        %1382 = vmatpush2.xpose.msra.mxu0 0.0
        %1383 = vmatprep.mubr.f32.mxu0 0.0
        %1384 = vmatmul.mubr.f32.gmra.mxu0 %v1314
        %v1385 = vpop.f32.mrf.mxu0
        %v1386 = vadd.f32 0.0, %v1385
        %v1387 = vpop.f32.mrf.mxu0
        %1388 = vdwg.mxu0
        %v1390 = vsel %vm1236, %v942, 0
        %v1393 = vsel %vm1236, %v1088, 0
        %1395 = vmatprep.subr.mxu0 0.0
        %1396 = vmatpush1.xpose.msra.mxu0 0.0
        %1397 = vmatprep.subr.mxu0 0.0
        %1398 = vmatpush1.xpose.msra.mxu0 0.0
        %1399 = vmatprep.subr.mxu0 0.0
        %1400 = vmatpush1.xpose.msra.mxu0 0.0
        %1401 = vmatprep.subr.mxu0 0.0
        %1402 = vmatpush1.xpose.msra.mxu0 0.0
        %1403 = vmatprep.subr.mxu0 0.0
        %1404 = vmatpush1.xpose.msra.mxu0 0.0
        %1405 = vmatprep.subr.mxu0 0.0
        %1406 = vmatpush1.xpose.msra.mxu0 0.0
        %1407 = vmatprep.subr.mxu0 0.0
        %1408 = vmatpush1.xpose.msra.mxu0 0.0
        %1409 = vmatprep.subr.mxu0 0.0
        %1410 = vmatpush1.xpose.msra.mxu0 0.0
        %1411 = vmatprep.subr.mxu0 0.0
        %1412 = vmatpush1.xpose.msra.mxu0 0.0
        %1413 = vmatprep.subr.mxu0 0.0
        %1414 = vmatpush1.xpose.msra.mxu0 0.0
        %1415 = vmatprep.subr.mxu0 0.0
        %1416 = vmatpush1.xpose.msra.mxu0 0.0
        %1417 = vmatprep.subr.mxu0 0.0
        %1418 = vmatpush1.xpose.msra.mxu0 0.0
        %1419 = vmatprep.subr.mxu0 0.0
        %1420 = vmatpush1.xpose.msra.mxu0 0.0
        %1421 = vmatprep.subr.mxu0 0.0
        %1422 = vmatpush1.xpose.msra.mxu0 0.0
        %1423 = vmatprep.subr.mxu0 0.0
        %1424 = vmatpush1.xpose.msra.mxu0 0.0
        %1425 = vmatprep.subr.mxu0 0.0
        %1426 = vmatpush1.xpose.msra.mxu0 %v1393
        %1427 = vmatprep.subr.mxu0 0.0
        %1428 = vmatpush2.xpose.msra.mxu0 0.0
        %1429 = vmatprep.subr.mxu0 0.0
        %1430 = vmatpush2.xpose.msra.mxu0 0.0
        %1431 = vmatprep.subr.mxu0 0.0
        %1432 = vmatpush2.xpose.msra.mxu0 0.0
        %1433 = vmatprep.subr.mxu0 0.0
        %1434 = vmatpush2.xpose.msra.mxu0 0.0
        %1435 = vmatprep.subr.mxu0 0.0
        %1436 = vmatpush2.xpose.msra.mxu0 0.0
        %1437 = vmatprep.subr.mxu0 0.0
        %1438 = vmatpush2.xpose.msra.mxu0 0.0
        %1439 = vmatprep.subr.mxu0 0.0
        %1440 = vmatpush2.xpose.msra.mxu0 0.0
        %1441 = vmatprep.subr.mxu0 0.0
        %1442 = vmatpush2.xpose.msra.mxu0 0.0
        %1443 = vmatprep.subr.mxu0 0.0
        %1444 = vmatpush2.xpose.msra.mxu0 0.0
        %1445 = vmatprep.subr.mxu0 0.0
        %1446 = vmatpush2.xpose.msra.mxu0 0.0
        %1447 = vmatprep.subr.mxu0 0.0
        %1448 = vmatpush2.xpose.msra.mxu0 0.0
        %1449 = vmatprep.subr.mxu0 0.0
        %1450 = vmatpush2.xpose.msra.mxu0 0.0
        %1451 = vmatprep.subr.mxu0 0.0
        %1452 = vmatpush2.xpose.msra.mxu0 0.0
        %1453 = vmatprep.subr.mxu0 0.0
        %1454 = vmatpush2.xpose.msra.mxu0 0.0
        %1455 = vmatprep.subr.mxu0 0.0
        %1456 = vmatpush2.xpose.msra.mxu0 0.0
        %1457 = vmatprep.subr.mxu0 0.0
        %1458 = vmatpush2.xpose.msra.mxu0 0.0
        %1459 = vmatprep.mubr.f32.mxu0 0.0
        %1460 = vmatmul.mubr.f32.gmra.mxu0 %v1390
        %v1461 = vpop.f32.mrf.mxu0
        %v1462 = vadd.f32 0.0, %v1461
        %v1463 = vpop.f32.mrf.mxu0
        %1464 = vdwg.mxu0
        %v1466 = vsel %vm1236, %v943, 0
        %v1469 = vsel %vm1236, %v1089, 0
        %1471 = vmatprep.subr.mxu0 0.0
        %1472 = vmatpush1.xpose.msra.mxu0 0.0
        %1473 = vmatprep.subr.mxu0 0.0
        %1474 = vmatpush1.xpose.msra.mxu0 0.0
        %1475 = vmatprep.subr.mxu0 0.0
        %1476 = vmatpush1.xpose.msra.mxu0 0.0
        %1477 = vmatprep.subr.mxu0 0.0
        %1478 = vmatpush1.xpose.msra.mxu0 0.0
        %1479 = vmatprep.subr.mxu0 0.0
        %1480 = vmatpush1.xpose.msra.mxu0 0.0
        %1481 = vmatprep.subr.mxu0 0.0
        %1482 = vmatpush1.xpose.msra.mxu0 0.0
        %1483 = vmatprep.subr.mxu0 0.0
        %1484 = vmatpush1.xpose.msra.mxu0 0.0
        %1485 = vmatprep.subr.mxu0 0.0
        %1486 = vmatpush1.xpose.msra.mxu0 0.0
        %1487 = vmatprep.subr.mxu0 0.0
        %1488 = vmatpush1.xpose.msra.mxu0 0.0
        %1489 = vmatprep.subr.mxu0 0.0
        %1490 = vmatpush1.xpose.msra.mxu0 0.0
        %1491 = vmatprep.subr.mxu0 0.0
        %1492 = vmatpush1.xpose.msra.mxu0 0.0
        %1493 = vmatprep.subr.mxu0 0.0
        %1494 = vmatpush1.xpose.msra.mxu0 0.0
        %1495 = vmatprep.subr.mxu0 0.0
        %1496 = vmatpush1.xpose.msra.mxu0 0.0
        %1497 = vmatprep.subr.mxu0 0.0
        %1498 = vmatpush1.xpose.msra.mxu0 0.0
        %1499 = vmatprep.subr.mxu0 0.0
        %1500 = vmatpush1.xpose.msra.mxu0 0.0
        %1501 = vmatprep.subr.mxu0 0.0
        %1502 = vmatpush1.xpose.msra.mxu0 %v1469
        %1503 = vmatprep.subr.mxu0 0.0
        %1504 = vmatpush2.xpose.msra.mxu0 0.0
        %1505 = vmatprep.subr.mxu0 0.0
        %1506 = vmatpush2.xpose.msra.mxu0 0.0
        %1507 = vmatprep.subr.mxu0 0.0
        %1508 = vmatpush2.xpose.msra.mxu0 0.0
        %1509 = vmatprep.subr.mxu0 0.0
        %1510 = vmatpush2.xpose.msra.mxu0 0.0
        %1511 = vmatprep.subr.mxu0 0.0
        %1512 = vmatpush2.xpose.msra.mxu0 0.0
        %1513 = vmatprep.subr.mxu0 0.0
        %1514 = vmatpush2.xpose.msra.mxu0 0.0
        %1515 = vmatprep.subr.mxu0 0.0
        %1516 = vmatpush2.xpose.msra.mxu0 0.0
        %1517 = vmatprep.subr.mxu0 0.0
        %1518 = vmatpush2.xpose.msra.mxu0 0.0
        %1519 = vmatprep.subr.mxu0 0.0
        %1520 = vmatpush2.xpose.msra.mxu0 0.0
        %1521 = vmatprep.subr.mxu0 0.0
        %1522 = vmatpush2.xpose.msra.mxu0 0.0
        %1523 = vmatprep.subr.mxu0 0.0
        %1524 = vmatpush2.xpose.msra.mxu0 0.0
        %1525 = vmatprep.subr.mxu0 0.0
        %1526 = vmatpush2.xpose.msra.mxu0 0.0
        %1527 = vmatprep.subr.mxu0 0.0
        %1528 = vmatpush2.xpose.msra.mxu0 0.0
        %1529 = vmatprep.subr.mxu0 0.0
        %1530 = vmatpush2.xpose.msra.mxu0 0.0
        %1531 = vmatprep.subr.mxu0 0.0
        %1532 = vmatpush2.xpose.msra.mxu0 0.0
        %1533 = vmatprep.subr.mxu0 0.0
        %1534 = vmatpush2.xpose.msra.mxu0 0.0
        %1535 = vmatprep.mubr.f32.mxu0 0.0
        %1536 = vmatmul.mubr.f32.gmra.mxu0 %v1466
        %v1537 = vpop.f32.mrf.mxu0
        %v1538 = vadd.f32 0.0, %v1537
        %v1539 = vpop.f32.mrf.mxu0
        %1540 = vdwg.mxu0
        %v1541 = vsel %vm1236, %v1310, -inf
        %1542 = vmax.xlane.f32.xlu0 %v1541
        %v1543 = vpop.xlane.xlu0 %1542
        %v1544 = vsel %vm1236, %v1386, -inf
        %1545 = vmax.xlane.f32.xlu0 %v1544
        %v1546 = vpop.xlane.xlu0 %1545
        %v1547 = vsel %vm1236, %v1462, -inf
        %1548 = vmax.xlane.f32.xlu0 %v1547
        %v1549 = vpop.xlane.xlu0 %1548
        %v1550 = vsel %vm1236, %v1538, -inf
        %1551 = vmax.xlane.f32.xlu0 %v1550
        %v1552 = vpop.xlane.xlu0 %1551
        %v1553 = vsub.f32 %v1310, %v1543
        %v1554 = vsub.f32 %v1386, %v1546
        %v1555 = vsub.f32 %v1462, %v1549
        %v1556 = vsub.f32 %v1538, %v1552
        %v1557 = vmul.f32 %v1553, 1.442695
        %v1558 = vpow.pop %v1557
        %v1559 = vmul.f32 %v1554, 1.442695
        %v1560 = vpow.pop %v1559
        %v1561 = vmul.f32 %v1555, 1.442695
        %v1562 = vpow.pop %v1561
        %v1563 = vmul.f32 %v1556, 1.442695
        %v1564 = vpow.pop %v1563
        %v1565 = vsel %vm1236, %v1558, 0.0
        %1566 = vadd.xlane.f32.xlu0 %v1565
        %v1567 = vpop.xlane.xlu0 %1566
        %v1568 = vsel %vm1236, %v1560, 0.0
        %1569 = vadd.xlane.f32.xlu0 %v1568
        %v1570 = vpop.xlane.xlu0 %1569
        %v1571 = vsel %vm1236, %v1562, 0.0
        %1572 = vadd.xlane.f32.xlu0 %v1571
        %v1573 = vpop.xlane.xlu0 %1572
        %v1574 = vsel %vm1236, %v1564, 0.0
        %1575 = vadd.xlane.f32.xlu0 %v1574
        %v1576 = vpop.xlane.xlu0 %1575
        %v1577 = vrcp.pop %v1567
        %v1578 = vmul.f32 1.0, %v1577
        %v1579 = vrcp.pop %v1570
        %v1580 = vmul.f32 1.0, %v1579
        %v1581 = vrcp.pop %v1573
        %v1582 = vmul.f32 1.0, %v1581
        %v1583 = vrcp.pop %v1576
        %v1584 = vmul.f32 1.0, %v1583
        %v1585 = vmul.f32 %v1558, %v1578
        %v1586 = vmul.f32 %v1560, %v1580
        %v1587 = vmul.f32 %v1562, %v1582
        %v1588 = vmul.f32 %v1564, %v1584
        %v1590 = vsel %vm1236, %v1585, 0
        %1592 = vmatprep.subr.mxu0 0.0
        %1593 = vmatpush1.msra.mxu0 0.0
        %1594 = vmatprep.subr.mxu0 0.0
        %1595 = vmatpush1.msra.mxu0 0.0
        %1596 = vmatprep.subr.mxu0 0.0
        %1597 = vmatpush1.msra.mxu0 0.0
        %1598 = vmatprep.subr.mxu0 0.0
        %1599 = vmatpush1.msra.mxu0 0.0
        %1600 = vmatprep.subr.mxu0 0.0
        %1601 = vmatpush1.msra.mxu0 0.0
        %1602 = vmatprep.subr.mxu0 0.0
        %1603 = vmatpush1.msra.mxu0 0.0
        %1604 = vmatprep.subr.mxu0 0.0
        %1605 = vmatpush1.msra.mxu0 0.0
        %1606 = vmatprep.subr.mxu0 0.0
        %1607 = vmatpush1.msra.mxu0 0.0
        %1608 = vmatprep.subr.mxu0 0.0
        %1609 = vmatpush1.msra.mxu0 0.0
        %1610 = vmatprep.subr.mxu0 0.0
        %1611 = vmatpush1.msra.mxu0 0.0
        %1612 = vmatprep.subr.mxu0 0.0
        %1613 = vmatpush1.msra.mxu0 0.0
        %1614 = vmatprep.subr.mxu0 0.0
        %1615 = vmatpush1.msra.mxu0 0.0
        %1616 = vmatprep.subr.mxu0 0.0
        %1617 = vmatpush1.msra.mxu0 0.0
        %1618 = vmatprep.subr.mxu0 0.0
        %1619 = vmatpush1.msra.mxu0 0.0
        %1620 = vmatprep.subr.mxu0 0.0
        %1621 = vmatpush1.msra.mxu0 0.0
        %1622 = vmatprep.subr.mxu0 0.0
        %1623 = vmatpush1.msra.mxu0 %v1232
        %1624 = vmatprep.subr.mxu0 0.0
        %1625 = vmatpush2.msra.mxu0 0.0
        %1626 = vmatprep.subr.mxu0 0.0
        %1627 = vmatpush2.msra.mxu0 0.0
        %1628 = vmatprep.subr.mxu0 0.0
        %1629 = vmatpush2.msra.mxu0 0.0
        %1630 = vmatprep.subr.mxu0 0.0
        %1631 = vmatpush2.msra.mxu0 0.0
        %1632 = vmatprep.subr.mxu0 0.0
        %1633 = vmatpush2.msra.mxu0 0.0
        %1634 = vmatprep.subr.mxu0 0.0
        %1635 = vmatpush2.msra.mxu0 0.0
        %1636 = vmatprep.subr.mxu0 0.0
        %1637 = vmatpush2.msra.mxu0 0.0
        %1638 = vmatprep.subr.mxu0 0.0
        %1639 = vmatpush2.msra.mxu0 0.0
        %1640 = vmatprep.subr.mxu0 0.0
        %1641 = vmatpush2.msra.mxu0 0.0
        %1642 = vmatprep.subr.mxu0 0.0
        %1643 = vmatpush2.msra.mxu0 0.0
        %1644 = vmatprep.subr.mxu0 0.0
        %1645 = vmatpush2.msra.mxu0 0.0
        %1646 = vmatprep.subr.mxu0 0.0
        %1647 = vmatpush2.msra.mxu0 0.0
        %1648 = vmatprep.subr.mxu0 0.0
        %1649 = vmatpush2.msra.mxu0 0.0
        %1650 = vmatprep.subr.mxu0 0.0
        %1651 = vmatpush2.msra.mxu0 0.0
        %1652 = vmatprep.subr.mxu0 0.0
        %1653 = vmatpush2.msra.mxu0 0.0
        %1654 = vmatprep.subr.mxu0 0.0
        %1655 = vmatpush2.msra.mxu0 0.0
        %1656 = vmatprep.mubr.f32.mxu0 0.0
        %1657 = vmatmul.mubr.f32.gmra.mxu0 %v1590
        %v1658 = vpop.f32.mrf.mxu0
        %v1659 = vadd.f32 0.0, %v1658
        %v1660 = vpop.f32.mrf.mxu0
        %1661 = vdwg.mxu0
        %v1663 = vsel %vm1236, %v1586, 0
        %1665 = vmatprep.subr.mxu0 0.0
        %1666 = vmatpush1.msra.mxu0 0.0
        %1667 = vmatprep.subr.mxu0 0.0
        %1668 = vmatpush1.msra.mxu0 0.0
        %1669 = vmatprep.subr.mxu0 0.0
        %1670 = vmatpush1.msra.mxu0 0.0
        %1671 = vmatprep.subr.mxu0 0.0
        %1672 = vmatpush1.msra.mxu0 0.0
        %1673 = vmatprep.subr.mxu0 0.0
        %1674 = vmatpush1.msra.mxu0 0.0
        %1675 = vmatprep.subr.mxu0 0.0
        %1676 = vmatpush1.msra.mxu0 0.0
        %1677 = vmatprep.subr.mxu0 0.0
        %1678 = vmatpush1.msra.mxu0 0.0
        %1679 = vmatprep.subr.mxu0 0.0
        %1680 = vmatpush1.msra.mxu0 0.0
        %1681 = vmatprep.subr.mxu0 0.0
        %1682 = vmatpush1.msra.mxu0 0.0
        %1683 = vmatprep.subr.mxu0 0.0
        %1684 = vmatpush1.msra.mxu0 0.0
        %1685 = vmatprep.subr.mxu0 0.0
        %1686 = vmatpush1.msra.mxu0 0.0
        %1687 = vmatprep.subr.mxu0 0.0
        %1688 = vmatpush1.msra.mxu0 0.0
        %1689 = vmatprep.subr.mxu0 0.0
        %1690 = vmatpush1.msra.mxu0 0.0
        %1691 = vmatprep.subr.mxu0 0.0
        %1692 = vmatpush1.msra.mxu0 0.0
        %1693 = vmatprep.subr.mxu0 0.0
        %1694 = vmatpush1.msra.mxu0 0.0
        %1695 = vmatprep.subr.mxu0 0.0
        %1696 = vmatpush1.msra.mxu0 %v1233
        %1697 = vmatprep.subr.mxu0 0.0
        %1698 = vmatpush2.msra.mxu0 0.0
        %1699 = vmatprep.subr.mxu0 0.0
        %1700 = vmatpush2.msra.mxu0 0.0
        %1701 = vmatprep.subr.mxu0 0.0
        %1702 = vmatpush2.msra.mxu0 0.0
        %1703 = vmatprep.subr.mxu0 0.0
        %1704 = vmatpush2.msra.mxu0 0.0
        %1705 = vmatprep.subr.mxu0 0.0
        %1706 = vmatpush2.msra.mxu0 0.0
        %1707 = vmatprep.subr.mxu0 0.0
        %1708 = vmatpush2.msra.mxu0 0.0
        %1709 = vmatprep.subr.mxu0 0.0
        %1710 = vmatpush2.msra.mxu0 0.0
        %1711 = vmatprep.subr.mxu0 0.0
        %1712 = vmatpush2.msra.mxu0 0.0
        %1713 = vmatprep.subr.mxu0 0.0
        %1714 = vmatpush2.msra.mxu0 0.0
        %1715 = vmatprep.subr.mxu0 0.0
        %1716 = vmatpush2.msra.mxu0 0.0
        %1717 = vmatprep.subr.mxu0 0.0
        %1718 = vmatpush2.msra.mxu0 0.0
        %1719 = vmatprep.subr.mxu0 0.0
        %1720 = vmatpush2.msra.mxu0 0.0
        %1721 = vmatprep.subr.mxu0 0.0
        %1722 = vmatpush2.msra.mxu0 0.0
        %1723 = vmatprep.subr.mxu0 0.0
        %1724 = vmatpush2.msra.mxu0 0.0
        %1725 = vmatprep.subr.mxu0 0.0
        %1726 = vmatpush2.msra.mxu0 0.0
        %1727 = vmatprep.subr.mxu0 0.0
        %1728 = vmatpush2.msra.mxu0 0.0
        %1729 = vmatprep.mubr.f32.mxu0 0.0
        %1730 = vmatmul.mubr.f32.gmra.mxu0 %v1663
        %v1731 = vpop.f32.mrf.mxu0
        %v1732 = vadd.f32 0.0, %v1731
        %v1733 = vpop.f32.mrf.mxu0
        %1734 = vdwg.mxu0
        %v1736 = vsel %vm1236, %v1587, 0
        %1738 = vmatprep.subr.mxu0 0.0
        %1739 = vmatpush1.msra.mxu0 0.0
        %1740 = vmatprep.subr.mxu0 0.0
        %1741 = vmatpush1.msra.mxu0 0.0
        %1742 = vmatprep.subr.mxu0 0.0
        %1743 = vmatpush1.msra.mxu0 0.0
        %1744 = vmatprep.subr.mxu0 0.0
        %1745 = vmatpush1.msra.mxu0 0.0
        %1746 = vmatprep.subr.mxu0 0.0
        %1747 = vmatpush1.msra.mxu0 0.0
        %1748 = vmatprep.subr.mxu0 0.0
        %1749 = vmatpush1.msra.mxu0 0.0
        %1750 = vmatprep.subr.mxu0 0.0
        %1751 = vmatpush1.msra.mxu0 0.0
        %1752 = vmatprep.subr.mxu0 0.0
        %1753 = vmatpush1.msra.mxu0 0.0
        %1754 = vmatprep.subr.mxu0 0.0
        %1755 = vmatpush1.msra.mxu0 0.0
        %1756 = vmatprep.subr.mxu0 0.0
        %1757 = vmatpush1.msra.mxu0 0.0
        %1758 = vmatprep.subr.mxu0 0.0
        %1759 = vmatpush1.msra.mxu0 0.0
        %1760 = vmatprep.subr.mxu0 0.0
        %1761 = vmatpush1.msra.mxu0 0.0
        %1762 = vmatprep.subr.mxu0 0.0
        %1763 = vmatpush1.msra.mxu0 0.0
        %1764 = vmatprep.subr.mxu0 0.0
        %1765 = vmatpush1.msra.mxu0 0.0
        %1766 = vmatprep.subr.mxu0 0.0
        %1767 = vmatpush1.msra.mxu0 0.0
        %1768 = vmatprep.subr.mxu0 0.0
        %1769 = vmatpush1.msra.mxu0 %v1234
        %1770 = vmatprep.subr.mxu0 0.0
        %1771 = vmatpush2.msra.mxu0 0.0
        %1772 = vmatprep.subr.mxu0 0.0
        %1773 = vmatpush2.msra.mxu0 0.0
        %1774 = vmatprep.subr.mxu0 0.0
        %1775 = vmatpush2.msra.mxu0 0.0
        %1776 = vmatprep.subr.mxu0 0.0
        %1777 = vmatpush2.msra.mxu0 0.0
        %1778 = vmatprep.subr.mxu0 0.0
        %1779 = vmatpush2.msra.mxu0 0.0
        %1780 = vmatprep.subr.mxu0 0.0
        %1781 = vmatpush2.msra.mxu0 0.0
        %1782 = vmatprep.subr.mxu0 0.0
        %1783 = vmatpush2.msra.mxu0 0.0
        %1784 = vmatprep.subr.mxu0 0.0
        %1785 = vmatpush2.msra.mxu0 0.0
        %1786 = vmatprep.subr.mxu0 0.0
        %1787 = vmatpush2.msra.mxu0 0.0
        %1788 = vmatprep.subr.mxu0 0.0
        %1789 = vmatpush2.msra.mxu0 0.0
        %1790 = vmatprep.subr.mxu0 0.0
        %1791 = vmatpush2.msra.mxu0 0.0
        %1792 = vmatprep.subr.mxu0 0.0
        %1793 = vmatpush2.msra.mxu0 0.0
        %1794 = vmatprep.subr.mxu0 0.0
        %1795 = vmatpush2.msra.mxu0 0.0
        %1796 = vmatprep.subr.mxu0 0.0
        %1797 = vmatpush2.msra.mxu0 0.0
        %1798 = vmatprep.subr.mxu0 0.0
        %1799 = vmatpush2.msra.mxu0 0.0
        %1800 = vmatprep.subr.mxu0 0.0
        %1801 = vmatpush2.msra.mxu0 0.0
        %1802 = vmatprep.mubr.f32.mxu0 0.0
        %1803 = vmatmul.mubr.f32.gmra.mxu0 %v1736
        %v1804 = vpop.f32.mrf.mxu0
        %v1805 = vadd.f32 0.0, %v1804
        %v1806 = vpop.f32.mrf.mxu0
        %1807 = vdwg.mxu0
        %v1809 = vsel %vm1236, %v1588, 0
        %1811 = vmatprep.subr.mxu0 0.0
        %1812 = vmatpush1.msra.mxu0 0.0
        %1813 = vmatprep.subr.mxu0 0.0
        %1814 = vmatpush1.msra.mxu0 0.0
        %1815 = vmatprep.subr.mxu0 0.0
        %1816 = vmatpush1.msra.mxu0 0.0
        %1817 = vmatprep.subr.mxu0 0.0
        %1818 = vmatpush1.msra.mxu0 0.0
        %1819 = vmatprep.subr.mxu0 0.0
        %1820 = vmatpush1.msra.mxu0 0.0
        %1821 = vmatprep.subr.mxu0 0.0
        %1822 = vmatpush1.msra.mxu0 0.0
        %1823 = vmatprep.subr.mxu0 0.0
        %1824 = vmatpush1.msra.mxu0 0.0
        %1825 = vmatprep.subr.mxu0 0.0
        %1826 = vmatpush1.msra.mxu0 0.0
        %1827 = vmatprep.subr.mxu0 0.0
        %1828 = vmatpush1.msra.mxu0 0.0
        %1829 = vmatprep.subr.mxu0 0.0
        %1830 = vmatpush1.msra.mxu0 0.0
        %1831 = vmatprep.subr.mxu0 0.0
        %1832 = vmatpush1.msra.mxu0 0.0
        %1833 = vmatprep.subr.mxu0 0.0
        %1834 = vmatpush1.msra.mxu0 0.0
        %1835 = vmatprep.subr.mxu0 0.0
        %1836 = vmatpush1.msra.mxu0 0.0
        %1837 = vmatprep.subr.mxu0 0.0
        %1838 = vmatpush1.msra.mxu0 0.0
        %1839 = vmatprep.subr.mxu0 0.0
        %1840 = vmatpush1.msra.mxu0 0.0
        %1841 = vmatprep.subr.mxu0 0.0
        %1842 = vmatpush1.msra.mxu0 %v1235
        %1843 = vmatprep.subr.mxu0 0.0
        %1844 = vmatpush2.msra.mxu0 0.0
        %1845 = vmatprep.subr.mxu0 0.0
        %1846 = vmatpush2.msra.mxu0 0.0
        %1847 = vmatprep.subr.mxu0 0.0
        %1848 = vmatpush2.msra.mxu0 0.0
        %1849 = vmatprep.subr.mxu0 0.0
        %1850 = vmatpush2.msra.mxu0 0.0
        %1851 = vmatprep.subr.mxu0 0.0
        %1852 = vmatpush2.msra.mxu0 0.0
        %1853 = vmatprep.subr.mxu0 0.0
        %1854 = vmatpush2.msra.mxu0 0.0
        %1855 = vmatprep.subr.mxu0 0.0
        %1856 = vmatpush2.msra.mxu0 0.0
        %1857 = vmatprep.subr.mxu0 0.0
        %1858 = vmatpush2.msra.mxu0 0.0
        %1859 = vmatprep.subr.mxu0 0.0
        %1860 = vmatpush2.msra.mxu0 0.0
        %1861 = vmatprep.subr.mxu0 0.0
        %1862 = vmatpush2.msra.mxu0 0.0
        %1863 = vmatprep.subr.mxu0 0.0
        %1864 = vmatpush2.msra.mxu0 0.0
        %1865 = vmatprep.subr.mxu0 0.0
        %1866 = vmatpush2.msra.mxu0 0.0
        %1867 = vmatprep.subr.mxu0 0.0
        %1868 = vmatpush2.msra.mxu0 0.0
        %1869 = vmatprep.subr.mxu0 0.0
        %1870 = vmatpush2.msra.mxu0 0.0
        %1871 = vmatprep.subr.mxu0 0.0
        %1872 = vmatpush2.msra.mxu0 0.0
        %1873 = vmatprep.subr.mxu0 0.0
        %1874 = vmatpush2.msra.mxu0 0.0
        %1875 = vmatprep.mubr.f32.mxu0 0.0
        %1876 = vmatmul.mubr.f32.gmra.mxu0 %v1809
        %v1877 = vpop.f32.mrf.mxu0
        %v1878 = vadd.f32 0.0, %v1877
        %v1879 = vpop.f32.mrf.mxu0
        %1880 = vdwg.mxu0
        %v1881 = vcombine.low %v1659, %v1805
        %v1882 = vcombine.high %v1659, %v1805
        %v1884 = vunpack.c.l.s4 1983009808
        %v1885 = vunpack.c.0.s8 %v1884
        %v1886 = vlaneseq
        %v1887 = vshrl.u32 %v1886, 7
        %v1888 = vsub.s32 %v1885, %v1887
        %v1889 = vrot.slane %v1881, %v1888
        %v1891 = vunpack.c.l.s4 1983009808
        %v1892 = vunpack.c.0.s8 %v1891
        %v1893 = vlaneseq
        %v1894 = vshrl.u32 %v1893, 7
        %v1895 = vsub.s32 %v1892, %v1894
        %v1896 = vrot.slane %v1882, %v1895
        %v1897 = vcombine.low %v1732, %v1878
        %v1898 = vcombine.high %v1732, %v1878
        %v1900 = vunpack.c.l.s4 1983009808
        %v1901 = vunpack.c.0.s8 %v1900
        %v1902 = vlaneseq
        %v1903 = vshrl.u32 %v1902, 7
        %v1904 = vsub.s32 %v1901, %v1903
        %v1905 = vrot.slane %v1897, %v1904
        %v1907 = vunpack.c.l.s4 1983009808
        %v1908 = vunpack.c.0.s8 %v1907
        %v1909 = vlaneseq
        %v1910 = vshrl.u32 %v1909, 7
        %v1911 = vsub.s32 %v1908, %v1910
        %v1912 = vrot.slane %v1898, %v1911
        %v1913 = vcombine.low %v1889, %v1905
        %v1914 = vcombine.high %v1889, %v1905
        %v1916 = vunpack.c.l.s4 1934713408
        %v1917 = vunpack.c.0.s8 %v1916
        %v1918 = vlaneseq
        %v1919 = vshrl.u32 %v1918, 7
        %v1920 = vsub.s32 %v1917, %v1919
        %v1921 = vrot.slane %v1913, %v1920
        %v1923 = vunpack.c.l.s4 1934713408
        %v1924 = vunpack.c.0.s8 %v1923
        %v1925 = vlaneseq
        %v1926 = vshrl.u32 %v1925, 7
        %v1927 = vsub.s32 %v1924, %v1926
        %v1928 = vrot.slane %v1914, %v1927
        %v1929 = vcombine.low %v1896, %v1912
        %v1930 = vcombine.high %v1896, %v1912
        %v1932 = vunpack.c.l.s4 1934713408
        %v1933 = vunpack.c.0.s8 %v1932
        %v1934 = vlaneseq
        %v1935 = vshrl.u32 %v1934, 7
        %v1936 = vsub.s32 %v1933, %v1935
        %v1937 = vrot.slane %v1929, %v1936
        %v1939 = vunpack.c.l.s4 1934713408
        %v1940 = vunpack.c.0.s8 %v1939
        %v1941 = vlaneseq
        %v1942 = vshrl.u32 %v1941, 7
        %v1943 = vsub.s32 %v1940, %v1942
        %v1944 = vrot.slane %v1930, %v1943
        %v1945 = vcombine.high %v1921, 0.0
        %v1946 = vcombine.high %v1928, 0.0
        %v1947 = vcombine.high %v1937, 0.0
        %v1948 = vcombine.high %v1944, 0.0
        %v1949 = vcombine.low %v1921, %v1928
        %v1951 = vunpack.c.l.s4 1983009808
        %v1952 = vunpack.c.0.s8 %v1951
        %v1953 = vlaneseq
        %v1954 = vshrl.u32 %v1953, 7
        %v1955 = vsub.s32 %v1952, %v1954
        %v1956 = vrot.slane %v1949, %v1955
        %v1957 = vcombine.low %v1945, %v1946
        %v1959 = vunpack.c.l.s4 1983009808
        %v1960 = vunpack.c.0.s8 %v1959
        %v1961 = vlaneseq
        %v1962 = vshrl.u32 %v1961, 7
        %v1963 = vsub.s32 %v1960, %v1962
        %v1964 = vrot.slane %v1957, %v1963
        %v1965 = vcombine.low %v1937, %v1944
        %v1967 = vunpack.c.l.s4 1983009808
        %v1968 = vunpack.c.0.s8 %v1967
        %v1969 = vlaneseq
        %v1970 = vshrl.u32 %v1969, 7
        %v1971 = vsub.s32 %v1968, %v1970
        %v1972 = vrot.slane %v1965, %v1971
        %v1973 = vcombine.low %v1947, %v1948
        %v1975 = vunpack.c.l.s4 1983009808
        %v1976 = vunpack.c.0.s8 %v1975
        %v1977 = vlaneseq
        %v1978 = vshrl.u32 %v1977, 7
        %v1979 = vsub.s32 %v1976, %v1978
        %v1980 = vrot.slane %v1973, %v1979
        %v1981 = vcombine.low %v1956, %v1964
        %v1982 = vcombine.high %v1956, %v1964
        %v1984 = vunpack.c.l.s4 1934713408
        %v1985 = vunpack.c.0.s8 %v1984
        %v1986 = vlaneseq
        %v1987 = vshrl.u32 %v1986, 7
        %v1988 = vsub.s32 %v1985, %v1987
        %v1989 = vrot.slane %v1981, %v1988
        %v1991 = vunpack.c.l.s4 1934713408
        %v1992 = vunpack.c.0.s8 %v1991
        %v1993 = vlaneseq
        %v1994 = vshrl.u32 %v1993, 7
        %v1995 = vsub.s32 %v1992, %v1994
        %v1996 = vrot.slane %v1982, %v1995
        %v1997 = vcombine.low %v1972, %v1980
        %v1998 = vcombine.high %v1972, %v1980
        %v2000 = vunpack.c.l.s4 1934713408
        %v2001 = vunpack.c.0.s8 %v2000
        %v2002 = vlaneseq
        %v2003 = vshrl.u32 %v2002, 7
        %v2004 = vsub.s32 %v2001, %v2003
        %v2005 = vrot.slane %v1997, %v2004
        %v2007 = vunpack.c.l.s4 1934713408
        %v2008 = vunpack.c.0.s8 %v2007
        %v2009 = vlaneseq
        %v2010 = vshrl.u32 %v2009, 7
        %v2011 = vsub.s32 %v2008, %v2010
        %v2012 = vrot.slane %v1998, %v2011
        %v2013 = vcombine.low %v1989, %v2005
        %v2014 = vcombine.high %v1989, %v2005
        %v2015 = vcombine.low %v1996, %v2012
        %v2016 = vcombine.high %v1996, %v2012
        %2018 = vrot.lane.b32.xlu0 %v2014, 8
        %v2019 = vpop.permute.xlu0 %2018
        %2022 = vrot.lane.b32.xlu0 %v2015, 16
        %v2023 = vpop.permute.xlu0 %2022
        %2026 = vrot.lane.b32.xlu0 %v2016, 24
        %v2027 = vpop.permute.xlu0 %2026
        %v2029 = vsel %vm1236, %v2013, %v2019
        %vm2030 = vcmask 130048
        %v2031 = vsel %vm2030, %v2029, %v2023
        %vm2032 = vcmask 195584
        %v2033 = vsel %vm2032, %v2031, %v2027
        %v2035 = vlaneseq
        %v2036 = vshrl.u32 %v2035, 7
        %v2037 = vsub.s32 0, %v2036
        %v2038 = vrot.slane %v562, %v2037
        %v2041 = vsel %vm569, %v2033, 0
        %2043 = vmatprep.subr.mxu0 0.0
        %2044 = vmatpush1.msra.mxu0 0.0
        %2045 = vmatprep.subr.mxu0 0.0
        %2046 = vmatpush1.msra.mxu0 0.0
        %2047 = vmatprep.subr.mxu0 0.0
        %2048 = vmatpush1.msra.mxu0 0.0
        %2049 = vmatprep.subr.mxu0 0.0
        %2050 = vmatpush1.msra.mxu0 0.0
        %2051 = vmatprep.subr.mxu0 0.0
        %2052 = vmatpush1.msra.mxu0 0.0
        %2053 = vmatprep.subr.mxu0 0.0
        %2054 = vmatpush1.msra.mxu0 0.0
        %2055 = vmatprep.subr.mxu0 0.0
        %2056 = vmatpush1.msra.mxu0 0.0
        %2057 = vmatprep.subr.mxu0 0.0
        %2058 = vmatpush1.msra.mxu0 0.0
        %2059 = vmatprep.subr.mxu0 0.0
        %2060 = vmatpush1.msra.mxu0 0.0
        %2061 = vmatprep.subr.mxu0 0.0
        %2062 = vmatpush1.msra.mxu0 0.0
        %2063 = vmatprep.subr.mxu0 0.0
        %2064 = vmatpush1.msra.mxu0 0.0
        %2065 = vmatprep.subr.mxu0 0.0
        %2066 = vmatpush1.msra.mxu0 0.0
        %2067 = vmatprep.subr.mxu0 0.0
        %2068 = vmatpush1.msra.mxu0 %v561
        %2069 = vmatprep.subr.mxu0 0.0
        %2070 = vmatpush1.msra.mxu0 %v560
        %2071 = vmatprep.subr.mxu0 0.0
        %2072 = vmatpush1.msra.mxu0 %v559
        %2073 = vmatprep.subr.mxu0 0.0
        %2074 = vmatpush1.msra.mxu0 %v558
        %2075 = vmatprep.subr.mxu0 0.0
        %2076 = vmatpush2.msra.mxu0 0.0
        %2077 = vmatprep.subr.mxu0 0.0
        %2078 = vmatpush2.msra.mxu0 0.0
        %2079 = vmatprep.subr.mxu0 0.0
        %2080 = vmatpush2.msra.mxu0 0.0
        %2081 = vmatprep.subr.mxu0 0.0
        %2082 = vmatpush2.msra.mxu0 0.0
        %2083 = vmatprep.subr.mxu0 0.0
        %2084 = vmatpush2.msra.mxu0 0.0
        %2085 = vmatprep.subr.mxu0 0.0
        %2086 = vmatpush2.msra.mxu0 0.0
        %2087 = vmatprep.subr.mxu0 0.0
        %2088 = vmatpush2.msra.mxu0 0.0
        %2089 = vmatprep.subr.mxu0 0.0
        %2090 = vmatpush2.msra.mxu0 0.0
        %2091 = vmatprep.subr.mxu0 0.0
        %2092 = vmatpush2.msra.mxu0 0.0
        %2093 = vmatprep.subr.mxu0 0.0
        %2094 = vmatpush2.msra.mxu0 0.0
        %2095 = vmatprep.subr.mxu0 0.0
        %2096 = vmatpush2.msra.mxu0 0.0
        %2097 = vmatprep.subr.mxu0 0.0
        %2098 = vmatpush2.msra.mxu0 0.0
        %2099 = vmatprep.subr.mxu0 0.0
        %2100 = vmatpush2.msra.mxu0 0.0
        %2101 = vmatprep.subr.mxu0 0.0
        %2102 = vmatpush2.msra.mxu0 0.0
        %2103 = vmatprep.subr.mxu0 0.0
        %2104 = vmatpush2.msra.mxu0 0.0
        %2105 = vmatprep.subr.mxu0 0.0
        %2106 = vmatpush2.msra.mxu0 0.0
        %2107 = vmatprep.mubr.f32.mxu0 0.0
        %2108 = vmatmul.mubr.f32.gmra.mxu0 %v2041
        %v2109 = vpop.f32.mrf.mxu0
        %v2110 = vadd.f32 %v2038, %v2109
        %v2111 = vpop.f32.mrf.mxu0
        %2112 = vdwg.mxu0
        %v2113 = vld [vmem:[%s10] sm:$0x1]
        %v2114 = vld [vmem:[%s11] sm:$0x1]
        %v2115 = vsel %vm569, %v2110, 0.0
        %2116 = vadd.xlane.f32.xlu0 %v2115
        %v2117 = vpop.xlane.xlu0 %2116
        %v2118 = vrcp.pop 32.0
        %v2119 = vmul.f32 %v2117, %v2118
        %v2120 = vsub.f32 %v2110, %v2119
        %v2121 = vmul.f32 %v2120, %v2120
        %v2122 = vsel %vm569, %v2121, 0.0
        %2123 = vadd.xlane.f32.xlu0 %v2122
        %v2124 = vpop.xlane.xlu0 %2123
        %v2125 = vmul.f32 %v2124, %v2118
        %v2126 = vadd.f32 %v2125, 1e-05
        %v2127 = vrsqrt.pop %v2126
        %v2128 = vmul.f32 %v2120, %v2127
        %v2130 = vlaneseq
        %v2131 = vshrl.u32 %v2130, 7
        %v2132 = vsub.s32 0, %v2131
        %v2133 = vrot.slane %v2113, %v2132
        %v2135 = vmul.f32 %v2128, %v2133
        %v2137 = vlaneseq
        %v2138 = vshrl.u32 %v2137, 7
        %v2139 = vsub.s32 0, %v2138
        %v2140 = vrot.slane %v2114, %v2139
        %v2142 = vadd.f32 %v2135, %v2140
        %v2143 = vadd.f32 %v2142, %v541
        %2144 = vst.msk [vmem:[%s540] sm:$0xff] %vm569, %v2143
        %s2145 = sand.u32 %s320, 1
        %s2146 = scalar_lea.sflag [#allocation4], %s2145
        %s2147 = sand.u32 %s320, 1
        %s2148 = smul.addr %s2147, 8
        %s2149 = scalar_lea.vmem [#allocation13], %s2148
        // Predicated region
        $region93: #{tpu_custom_call.1} parent=67 // pred_check
          %p2150 = pneg %p330
        $region94: #{tpu_custom_call.1} parent=67 // pred_check_branch
          %2152 = sbr.rel (%p2150) target = $region96
        $region95: #{tpu_custom_call.1} parent=67 // pred_region
          %s2154 = ssub.s32 128, 128
          %2155 = vsyncadd %s2146, %s2154
          %s2156 = sadd.s32 %s39, %s38
          %s2157 = smul.addr %s2156, 128
          %s2158 = scalar_lea.hbm %s12, %s2157
          %s2160 = sshll.u32 %s2149, 4
          %s2161 = int_to_ptr.vmem [resolvable:$true] %s2160
          %2163 = dma.vmem_to_hbm [thread:$0]  %s2161, 128, %s2158, %s2146
        $region96: #{tpu_custom_call.1} parent=67 // pred_fallthru
          _
      $region68: #{tpu_custom_call.1} parent=5 // pred_fallthru
        _
      %p2164 = scmp.le.s32.totalorder 2, %s29
      // Predicated region
      $region97: #{tpu_custom_call.1} parent=5 // pred_check
        %p2165 = pneg %p2164
      $region98: #{tpu_custom_call.1} parent=5 // pred_check_branch
        %2167 = sbr.rel (%p2165) target = $region100
      $region99: #{tpu_custom_call.1} parent=5 // pred_region
        %s2168 = ssub.s32 %s29, 2
        // Predicated region
        $region101: #{tpu_custom_call.1} parent=99 // pred_check
          %p2169 = pneg %p336
        $region102: #{tpu_custom_call.1} parent=99 // pred_check_branch
          %2171 = sbr.rel (%p2169) target = $region104
        $region103: #{tpu_custom_call.1} parent=99 // pred_region
          %s2172 = sand.u32 %s321, 1
          %s2173 = scalar_lea.sflag [#allocation4], %s2172
          %s2174 = sand.u32 %s321, 1
          %s2175 = smul.addr %s2174, 8
          %s2176 = scalar_lea.vmem [#allocation13], %s2175
          %2177 = dma.done %s2173, 128
        $region104: #{tpu_custom_call.1} parent=99 // pred_fallthru
          _
      $region100: #{tpu_custom_call.1} parent=5 // pred_fallthru
        _
    $region6: #{tpu_custom_call.1} parent=1 // loop_footer
      %s33 = sadd.s32 1, %s29
    $region7: #{tpu_custom_call.1} parent=1 // loop_footer_branch
      %28 = sbr.rel target = $region3
    $region8: #{tpu_custom_call.1} parent=1 // loop_exit
      _
    %2178 = vsyncpa [#allocation3], 1
    %s2179 = scalar_lea.sflag [#allocation3], 1
    %2180 = vsyncpa %s2179, 1
    %2181 = vsyncpa [#allocation6], 1
    %s2182 = scalar_lea.sflag [#allocation6], 1
    %2183 = vsyncpa %s2182, 1
    %2184 = vsyncpa [#allocation9], 1
    %2185 = vsyncpa [#allocation12], 1
    %2186 = vsyncpa [#allocation4], 1
    %s2187 = scalar_lea.sflag [#allocation4], 1
    %2188 = vsyncpa %s2187, 1

</llo_original>
